<compile_context>
chip_gen: v7x
topology: tpu7x:2x2x1
jax: 0.10.0
libtpu: 0.0.40
codegen_flags: <defaults>
</compile_context>

<pallas_src>
import jax
import jax.numpy as jnp
from jax.experimental import pallas as pl
from jax.experimental.pallas import tpu as pltpu

# True model dims.
F_IN = 270   # input / output feature dim
F_LAT = 54   # latent dim

# Lane-padded dims.
P_IN = 384    # 3 * 128
P_LAT = 128   # latent padded to one full vreg of lanes
P_HEAD = 256  # fused heads: mu in lanes [0,128), log-sigma in lanes [128,256)


def vae_kernel(
    x_ref,      # (TB, 384)  f32 input tile (zero-padded past col 270)
    ew1_ref,    # (384, 384) bf16 encoder.linear1 weight (in, out)
    eb1_ref,    # (1, 384)   f32  encoder.linear1 bias
    ewh_ref,    # (384, 256) bf16 fused [mu | log-sigma] head weights
    ebh_ref,    # (1, 256)   f32  fused head biases
    dw1_ref,    # (128, 384) bf16 decoder.linear1 weight
    db1_ref,    # (1, 384)   f32
    dw2_ref,    # (384, 384) bf16 decoder.linear2 weight
    db2_ref,    # (1, 384)   f32
    eps_ref,    # (TB, 128)  f32 N(0,1) sample (zero-padded past col 54)
    out_ref,    # (TB, 384)  f32 decoder output tile
):
    bf16 = jnp.bfloat16

    # ---- Variational encoder ----
    h = jnp.dot(x_ref[...].astype(bf16), ew1_ref[...],
                preferred_element_type=jnp.float32) + eb1_ref[...]
    h = jnp.maximum(h, 0.0)  # relu (f32)

    # Fused mu / log-sigma heads: one MXU pass instead of two.
    y = jnp.dot(h.astype(bf16), ewh_ref[...],
                preferred_element_type=jnp.float32) + ebh_ref[...]
    mu = y[:, :P_LAT]            # lanes 0..53 real, rest zero
    log_sigma = y[:, P_LAT:]     # lanes 0..53 real, rest zero
    # Padded lanes: mu=0, exp(0)=1, eps=0  ->  z padded lanes are exactly 0.
    z = mu + jnp.exp(log_sigma) * eps_ref[...]

    # ---- Decoder ----
    d = jnp.dot(z.astype(bf16), dw1_ref[...],
                preferred_element_type=jnp.float32) + db1_ref[...]
    d = jnp.maximum(d, 0.0)  # relu (f32)

    o = jnp.dot(d.astype(bf16), dw2_ref[...],
                preferred_element_type=jnp.float32) + db2_ref[...]
    out_ref[...] = jax.nn.sigmoid(o)


def vae_forward(x, params, eps, *, tb=128):
    """x: (B, 270) f32, eps: (B, 54) f32, params: packed/padded dict."""
    B = x.shape[0]
    Bp = ((B + tb - 1) // tb) * tb
    xp = jnp.zeros((Bp, P_IN), jnp.float32).at[:B, :F_IN].set(x)
    ep = jnp.zeros((Bp, P_LAT), jnp.float32).at[:B, :F_LAT].set(eps)

    batch_in = lambda shape: pl.BlockSpec(shape, lambda i: (i, 0))
    resident = lambda shape: pl.BlockSpec(shape, lambda i: (0, 0))

    out = pl.pallas_call(
        vae_kernel,
        out_shape=jax.ShapeDtypeStruct((Bp, P_IN), jnp.float32),
        grid=(Bp // tb,),
        in_specs=[
            batch_in((tb, P_IN)),          # x tile
            resident((P_IN, P_IN)),        # ew1
            resident((1, P_IN)),           # eb1
            resident((P_IN, P_HEAD)),      # ewh (fused heads)
            resident((1, P_HEAD)),         # ebh
            resident((P_LAT, P_IN)),       # dw1
            resident((1, P_IN)),           # db1
            resident((P_IN, P_IN)),        # dw2
            resident((1, P_IN)),           # db2
            batch_in((tb, P_LAT)),         # eps tile
        ],
        out_specs=pl.BlockSpec((tb, P_IN), lambda i: (i, 0)),
        compiler_params=pltpu.CompilerParams(
            dimension_semantics=("parallel",)),
    )(
        xp,
        params["ew1"], params["eb1"],
        params["ewh"], params["ebh"],
        params["dw1"], params["db1"],
        params["dw2"], params["db2"],
        ep,
    )
    return out[:B, :F_IN]


# ----------------------------------------------------------------------------
# Parameter construction / packing
# ----------------------------------------------------------------------------
def init_raw_params(key):
    """PyTorch-default-style Linear init; weights stored as (in, out), fp32."""
    def linear(key, fan_in, fan_out):
        kw, kb = jax.random.split(key)
        bound = 1.0 / jnp.sqrt(jnp.float32(fan_in))
        w = jax.random.uniform(kw, (fan_in, fan_out), jnp.float32, -bound, bound)
        b = jax.random.uniform(kb, (1, fan_out), jnp.float32, -bound, bound)
        return w, b

    keys = jax.random.split(key, 5)
    ew1, eb1 = linear(keys[0], 270, 270)   # encoder.linear1
    ew2, eb2 = linear(keys[1], 270, 54)    # encoder.linear2 (mu)
    ew3, eb3 = linear(keys[2], 270, 54)    # encoder.linear3 (log sigma)
    dw1, db1 = linear(keys[3], 54, 270)    # decoder.linear1
    dw2, db2 = linear(keys[4], 270, 270)   # decoder.linear2
    return dict(ew1=ew1, eb1=eb1, ew2=ew2, eb2=eb2, ew3=ew3, eb3=eb3,
                dw1=dw1, db1=db1, dw2=dw2, db2=db2)


def pack_params(raw, weight_dtype=jnp.bfloat16):
    """Zero-pad to lane-friendly shapes, fuse the mu/log-sigma heads,
    and cast weights to bf16 (biases stay f32)."""
    def pad_w(w, rows, cols):
        out = jnp.zeros((rows, cols), jnp.float32)
        return out.at[:w.shape[0], :w.shape[1]].set(w).astype(weight_dtype)

    def pad_b(b, cols):
        return jnp.zeros((1, cols), jnp.float32).at[:, :b.shape[1]].set(b)

    ewh = jnp.zeros((P_IN, P_HEAD), jnp.float32)
    ewh = ewh.at[:F_IN, :F_LAT].set(raw["ew2"])                    # mu head
    ewh = ewh.at[:F_IN, P_LAT:P_LAT + F_LAT].set(raw["ew3"])       # log-sigma head
    ebh = jnp.zeros((1, P_HEAD), jnp.float32)
    ebh = ebh.at[:, :F_LAT].set(raw["eb2"])
    ebh = ebh.at[:, P_LAT:P_LAT + F_LAT].set(raw["eb3"])

    return dict(
        ew1=pad_w(raw["ew1"], P_IN, P_IN), eb1=pad_b(raw["eb1"], P_IN),
        ewh=ewh.astype(weight_dtype), ebh=ebh,
        dw1=pad_w(raw["dw1"], P_LAT, P_IN), db1=pad_b(raw["db1"], P_IN),
        dw2=pad_w(raw["dw2"], P_IN, P_IN), db2=pad_b(raw["db2"], P_IN),
    )


# ----------------------------------------------------------------------------
# References
# ----------------------------------------------------------------------------
def reference_forward_packed(x, params, eps):
    """Pure-JAX mirror of the kernel math (same padded bf16 weights,
    bf16 matmul inputs, f32 accumulate) — strict correctness check."""
    B = x.shape[0]
    bf16 = jnp.bfloat16
    xp = jnp.zeros((B, P_IN), jnp.float32).at[:, :F_IN].set(x)
    ep = jnp.zeros((B, P_LAT), jnp.float32).at[:, :F_LAT].set(eps)

    h = jnp.dot(xp.astype(bf16), params["ew1"],
                preferred_element_type=jnp.float32) + params["eb1"]
    h = jnp.maximum(h, 0.0)
    y = jnp.dot(h.astype(bf16), params["ewh"],
                preferred_element_type=jnp.float32) + params["ebh"]
    mu, log_sigma = y[:, :P_LAT], y[:, P_LAT:]
    z = mu + jnp.exp(log_sigma) * ep
    d = jnp.dot(z.astype(bf16), params["dw1"],
                preferred_element_type=jnp.float32) + params["db1"]
    d = jnp.maximum(d, 0.0)
    o = jnp.dot(d.astype(bf16), params["dw2"],
                preferred_element_type=jnp.float32) + params["db2"]
    return jax.nn.sigmoid(o)[:, :F_IN]


def reference_forward_fp32(x, raw, eps):
    """Full-precision reference with the original (unpadded) fp32 weights —
    semantics sanity check for the bf16-weight approximation."""
    h = jax.nn.relu(x @ raw["ew1"] + raw["eb1"])
    mu = h @ raw["ew2"] + raw["eb2"]
    sigma = jnp.exp(h @ raw["ew3"] + raw["eb3"])
    z = mu + sigma * eps
    d = jax.nn.relu(z @ raw["dw1"] + raw["db1"])
    return jax.nn.sigmoid(d @ raw["dw2"] + raw["db2"])


if __name__ == "__main__":
    key = jax.random.PRNGKey(0)
    k_param, k_x, k_eps = jax.random.split(key, 3)

    raw = init_raw_params(k_param)
    params = pack_params(raw)

    # Small test shapes: batch=10 (not a multiple of the tile) exercises the
    # batch-padding path with a 2-step grid at tb=8.
    B = 10
    x = jax.random.normal(k_x, (B, F_IN), jnp.float32)
    eps = jax.random.normal(k_eps, (B, F_LAT), jnp.float32)  # N(0,1) sample

    out = vae_forward(x, params, eps, tb=8)
    out = jax.block_until_ready(out)
    assert out.shape == (B, F_IN)

    # Strict check: same bf16-weight math as the kernel.
    ref = reference_forward_packed(x, params, eps)
    assert jnp.allclose(out, ref, atol=1e-3, rtol=1e-3), "mismatch vs packed ref"

    # Loose check: fp32 original-module semantics (bf16 weight rounding only).
    ref32 = reference_forward_fp32(x, raw, eps)
    assert jnp.max(jnp.abs(out - ref32)) < 5e-2, "semantics drift vs fp32 ref"

    print("KERNEL_OK")
</pallas_src>

<mosaic_0001>
module attributes {stable_mosaic.version = 11 : i64} {
  func.func @vae_kernel(%arg0: i32, %arg1: memref<8x384xf32, #tpu.memory_space<vmem>>, %arg2: memref<384x384xbf16, #tpu.memory_space<vmem>>, %arg3: memref<1x384xf32, #tpu.memory_space<vmem>>, %arg4: memref<384x256xbf16, #tpu.memory_space<vmem>>, %arg5: memref<1x256xf32, #tpu.memory_space<vmem>>, %arg6: memref<128x384xbf16, #tpu.memory_space<vmem>>, %arg7: memref<1x384xf32, #tpu.memory_space<vmem>>, %arg8: memref<384x384xbf16, #tpu.memory_space<vmem>>, %arg9: memref<1x384xf32, #tpu.memory_space<vmem>>, %arg10: memref<8x128xf32, #tpu.memory_space<vmem>>, %arg11: memref<8x384xf32, #tpu.memory_space<vmem>>) attributes {dimension_semantics = [#tpu.dimension_semantics<parallel>], iteration_bounds = array<i64: 2>, scalar_prefetch = 0 : i64, scratch_operands = 0 : i64, tpu.core_type = #tpu.core_type<tc>, window_params = [{transform_indices = @transform_0, window_bounds = array<i64: 8, 384>}, {pipeline_mode = #tpu.pipeline_mode<synchronous>, transform_indices = @transform_1, window_bounds = array<i64: 384, 384>}, {pipeline_mode = #tpu.pipeline_mode<synchronous>, transform_indices = @transform_2, window_bounds = array<i64: 1, 384>}, {pipeline_mode = #tpu.pipeline_mode<synchronous>, transform_indices = @transform_3, window_bounds = array<i64: 384, 256>}, {pipeline_mode = #tpu.pipeline_mode<synchronous>, transform_indices = @transform_4, window_bounds = array<i64: 1, 256>}, {pipeline_mode = #tpu.pipeline_mode<synchronous>, transform_indices = @transform_5, window_bounds = array<i64: 128, 384>}, {pipeline_mode = #tpu.pipeline_mode<synchronous>, transform_indices = @transform_6, window_bounds = array<i64: 1, 384>}, {pipeline_mode = #tpu.pipeline_mode<synchronous>, transform_indices = @transform_7, window_bounds = array<i64: 384, 384>}, {pipeline_mode = #tpu.pipeline_mode<synchronous>, transform_indices = @transform_8, window_bounds = array<i64: 1, 384>}, {transform_indices = @transform_9, window_bounds = array<i64: 8, 128>}, {transform_indices = @transform_10, window_bounds = array<i64: 8, 384>}]} {
    %c0 = arith.constant 0 : index
    %c0_0 = arith.constant 0 : index
    %0 = vector.load %arg1[%c0, %c0_0] : memref<8x384xf32, #tpu.memory_space<vmem>>, vector<8x384xf32>
    %1 = arith.truncf %0 : vector<8x384xf32> to vector<8x384xbf16>
    %c0_1 = arith.constant 0 : index
    %c0_2 = arith.constant 0 : index
    %2 = vector.load %arg2[%c0_1, %c0_2] : memref<384x384xbf16, #tpu.memory_space<vmem>>, vector<384x384xbf16>
    %cst = arith.constant dense<0.000000e+00> : vector<8x384xf32>
    %3 = tpu.matmul %1, %2, %cst {dimension_numbers = #tpu.dot_dimension_numbers<[1], [0], [0], [1], [0, 0, 1, 1], [], []>} : vector<8x384xbf16>, vector<384x384xbf16>, vector<8x384xf32> -> vector<8x384xf32>
    %c0_3 = arith.constant 0 : index
    %c0_4 = arith.constant 0 : index
    %4 = vector.load %arg3[%c0_3, %c0_4] : memref<1x384xf32, #tpu.memory_space<vmem>>, vector<1x384xf32>
    %5 = vector.broadcast %4 : vector<1x384xf32> to vector<8x384xf32>
    %6 = arith.addf %3, %5 : vector<8x384xf32>
    %cst_5 = arith.constant 0.000000e+00 : f32
    %7 = vector.broadcast %cst_5 : f32 to vector<8x384xf32>
    %8 = arith.maximumf %6, %7 : vector<8x384xf32>
    %9 = arith.truncf %8 : vector<8x384xf32> to vector<8x384xbf16>
    %c0_6 = arith.constant 0 : index
    %c0_7 = arith.constant 0 : index
    %10 = vector.load %arg4[%c0_6, %c0_7] : memref<384x256xbf16, #tpu.memory_space<vmem>>, vector<384x256xbf16>
    %cst_8 = arith.constant dense<0.000000e+00> : vector<8x256xf32>
    %11 = tpu.matmul %9, %10, %cst_8 {dimension_numbers = #tpu.dot_dimension_numbers<[1], [0], [0], [1], [0, 0, 1, 1], [], []>} : vector<8x384xbf16>, vector<384x256xbf16>, vector<8x256xf32> -> vector<8x256xf32>
    %c0_9 = arith.constant 0 : index
    %c0_10 = arith.constant 0 : index
    %12 = vector.load %arg5[%c0_9, %c0_10] : memref<1x256xf32, #tpu.memory_space<vmem>>, vector<1x256xf32>
    %13 = vector.broadcast %12 : vector<1x256xf32> to vector<8x256xf32>
    %14 = arith.addf %11, %13 : vector<8x256xf32>
    %15 = vector.extract_strided_slice %14 {offsets = [0, 0], sizes = [8, 128], strides = [1, 1]} : vector<8x256xf32> to vector<8x128xf32>
    %16 = vector.extract_strided_slice %14 {offsets = [0, 128], sizes = [8, 128], strides = [1, 1]} : vector<8x256xf32> to vector<8x128xf32>
    %17 = math.exp %16 : vector<8x128xf32>
    %c0_11 = arith.constant 0 : index
    %c0_12 = arith.constant 0 : index
    %18 = vector.load %arg10[%c0_11, %c0_12] : memref<8x128xf32, #tpu.memory_space<vmem>>, vector<8x128xf32>
    %19 = arith.mulf %17, %18 : vector<8x128xf32>
    %20 = arith.addf %15, %19 : vector<8x128xf32>
    %21 = arith.truncf %20 : vector<8x128xf32> to vector<8x128xbf16>
    %c0_13 = arith.constant 0 : index
    %c0_14 = arith.constant 0 : index
    %22 = vector.load %arg6[%c0_13, %c0_14] : memref<128x384xbf16, #tpu.memory_space<vmem>>, vector<128x384xbf16>
    %cst_15 = arith.constant dense<0.000000e+00> : vector<8x384xf32>
    %23 = tpu.matmul %21, %22, %cst_15 {dimension_numbers = #tpu.dot_dimension_numbers<[1], [0], [0], [1], [0, 0, 1, 1], [], []>} : vector<8x128xbf16>, vector<128x384xbf16>, vector<8x384xf32> -> vector<8x384xf32>
    %c0_16 = arith.constant 0 : index
    %c0_17 = arith.constant 0 : index
    %24 = vector.load %arg7[%c0_16, %c0_17] : memref<1x384xf32, #tpu.memory_space<vmem>>, vector<1x384xf32>
    %25 = vector.broadcast %24 : vector<1x384xf32> to vector<8x384xf32>
    %26 = arith.addf %23, %25 : vector<8x384xf32>
    %cst_18 = arith.constant 0.000000e+00 : f32
    %27 = vector.broadcast %cst_18 : f32 to vector<8x384xf32>
    %28 = arith.maximumf %26, %27 : vector<8x384xf32>
    %29 = arith.truncf %28 : vector<8x384xf32> to vector<8x384xbf16>
    %c0_19 = arith.constant 0 : index
    %c0_20 = arith.constant 0 : index
    %30 = vector.load %arg8[%c0_19, %c0_20] : memref<384x384xbf16, #tpu.memory_space<vmem>>, vector<384x384xbf16>
    %cst_21 = arith.constant dense<0.000000e+00> : vector<8x384xf32>
    %31 = tpu.matmul %29, %30, %cst_21 {dimension_numbers = #tpu.dot_dimension_numbers<[1], [0], [0], [1], [0, 0, 1, 1], [], []>} : vector<8x384xbf16>, vector<384x384xbf16>, vector<8x384xf32> -> vector<8x384xf32>
    %c0_22 = arith.constant 0 : index
    %c0_23 = arith.constant 0 : index
    %32 = vector.load %arg9[%c0_22, %c0_23] : memref<1x384xf32, #tpu.memory_space<vmem>>, vector<1x384xf32>
    %33 = vector.broadcast %32 : vector<1x384xf32> to vector<8x384xf32>
    %34 = arith.addf %31, %33 : vector<8x384xf32>
    %35 = arith.negf %34 : vector<8x384xf32>
    %36 = math.exp %35 : vector<8x384xf32>
    %cst_24 = arith.constant 1.000000e+00 : f32
    %37 = vector.broadcast %cst_24 : f32 to vector<8x384xf32>
    %38 = arith.addf %37, %36 : vector<8x384xf32>
    %39 = arith.divf %37, %38 : vector<8x384xf32>
    %c0_25 = arith.constant 0 : index
    %c0_26 = arith.constant 0 : index
    %40 = vector.load %arg11[%c0_25, %c0_26] : memref<8x384xf32, #tpu.memory_space<vmem>>, vector<8x384xf32>
    tpu.vector_store %arg11[%c0_25, %c0_26], %39 {strides = array<i32>} : memref<8x384xf32, #tpu.memory_space<vmem>>, vector<8x384xf32>,
    return
  }
  func.func @transform_0(%arg0: i32) -> (i32, i32) {
    %c0_i32 = arith.constant 0 : i32
    %c0_i32_0 = arith.constant 0 : i32
    return %arg0, %c0_i32 : i32, i32
  }
  func.func @transform_1(%arg0: i32) -> (i32, i32) {
    %c0_i32 = arith.constant 0 : i32
    %c0_i32_0 = arith.constant 0 : i32
    %c0_i32_1 = arith.constant 0 : i32
    return %c0_i32, %c0_i32_0 : i32, i32
  }
  func.func @transform_2(%arg0: i32) -> (i32, i32) {
    %c0_i32 = arith.constant 0 : i32
    %c0_i32_0 = arith.constant 0 : i32
    %c0_i32_1 = arith.constant 0 : i32
    return %c0_i32, %c0_i32_0 : i32, i32
  }
  func.func @transform_3(%arg0: i32) -> (i32, i32) {
    %c0_i32 = arith.constant 0 : i32
    %c0_i32_0 = arith.constant 0 : i32
    %c0_i32_1 = arith.constant 0 : i32
    return %c0_i32, %c0_i32_0 : i32, i32
  }
  func.func @transform_4(%arg0: i32) -> (i32, i32) {
    %c0_i32 = arith.constant 0 : i32
    %c0_i32_0 = arith.constant 0 : i32
    %c0_i32_1 = arith.constant 0 : i32
    return %c0_i32, %c0_i32_0 : i32, i32
  }
  func.func @transform_5(%arg0: i32) -> (i32, i32) {
    %c0_i32 = arith.constant 0 : i32
    %c0_i32_0 = arith.constant 0 : i32
    %c0_i32_1 = arith.constant 0 : i32
    return %c0_i32, %c0_i32_0 : i32, i32
  }
  func.func @transform_6(%arg0: i32) -> (i32, i32) {
    %c0_i32 = arith.constant 0 : i32
    %c0_i32_0 = arith.constant 0 : i32
    %c0_i32_1 = arith.constant 0 : i32
    return %c0_i32, %c0_i32_0 : i32, i32
  }
  func.func @transform_7(%arg0: i32) -> (i32, i32) {
    %c0_i32 = arith.constant 0 : i32
    %c0_i32_0 = arith.constant 0 : i32
    %c0_i32_1 = arith.constant 0 : i32
    return %c0_i32, %c0_i32_0 : i32, i32
  }
  func.func @transform_8(%arg0: i32) -> (i32, i32) {
    %c0_i32 = arith.constant 0 : i32
    %c0_i32_0 = arith.constant 0 : i32
    %c0_i32_1 = arith.constant 0 : i32
    return %c0_i32, %c0_i32_0 : i32, i32
  }
  func.func @transform_9(%arg0: i32) -> (i32, i32) {
    %c0_i32 = arith.constant 0 : i32
    %c0_i32_0 = arith.constant 0 : i32
    return %arg0, %c0_i32 : i32, i32
  }
  func.func @transform_10(%arg0: i32) -> (i32, i32) {
    %c0_i32 = arith.constant 0 : i32
    %c0_i32_0 = arith.constant 0 : i32
    return %arg0, %c0_i32 : i32, i32
  }
}

</mosaic_0001>

<llo_original>
// kernel: tpu_custom_call.1
$region0: #{tpu_custom_call.1}
  #allocation0 [shape = 'u32[]', space=smem, size = 0x4, offset = 0x4, fixed_abs, tag = 'smem constant byte address 0x4 - core index']
  #allocation1 [shape = 'u32[144,128]{1,0:T(1,128)}', space=vmem, size = 0x12000, scoped, tag = 'internal scratch']
  %s0 = inlined_call_operand.hbm [shape: f32[16,384], index: 0, kind: input, shape index: {}]
  %s1 = inlined_call_operand.hbm [shape: bf16[384,384], index: 1, kind: input, shape index: {}]
  %s2 = inlined_call_operand.vmem [shape: f32[1,384], index: 2, kind: input, shape index: {}]
  %s3 = inlined_call_operand.hbm [shape: bf16[384,256], index: 3, kind: input, shape index: {}]
  %s4 = inlined_call_operand.vmem [shape: f32[1,256], index: 4, kind: input, shape index: {}]
  %s5 = inlined_call_operand.hbm [shape: bf16[128,384], index: 5, kind: input, shape index: {}]
  %s6 = inlined_call_operand.vmem [shape: f32[1,384], index: 6, kind: input, shape index: {}]
  %s7 = inlined_call_operand.hbm [shape: bf16[384,384], index: 7, kind: input, shape index: {}]
  %s8 = inlined_call_operand.vmem [shape: f32[1,384], index: 8, kind: input, shape index: {}]
  %s9 = inlined_call_operand.vmem [shape: f32[16,128], index: 9, kind: input, shape index: {}]
  %s10 = inlined_call_operand.hbm [shape: f32[16,384], index: 10, kind: output, shape index: {}]
  %s11 = sld [smem:[#allocation0]]
  $region93: #{tpu_custom_call.1} parent=0
    _
  %s13 = ssub.s32 1, %s11
  %s14 = scalar_select 0, %s13, %s11
  $region1: #{tpu_custom_call.1} parent=0
    #allocation2 [shape = 'u8[24576]{0}', space=vmem, size = 0x6000, scoped, tag = 'input window, operand 0']
    #allocation3 [shape = 's32[2]{0}', space=sflag, size = 0x8, scoped, tag = 'scoped memory for tpu_custom_call.1']
    #allocation4 [shape = 's32[2]{0}', space=sflag, size = 0x8, scoped, tag = 'scoped memory for tpu_custom_call.1']
    #allocation5 [shape = 'u8[294912]{0}', space=vmem, size = 0x48000, scoped, tag = 'input window, operand 1, single buffered']
    #allocation6 [shape = 's32[1]{0}', space=sflag, size = 0x4, scoped, tag = 'scoped memory for tpu_custom_call.1']
    #allocation7 [shape = 'u8[196608]{0}', space=vmem, size = 0x30000, scoped, tag = 'input window, operand 3, single buffered']
    #allocation8 [shape = 'u8[98304]{0}', space=vmem, size = 0x18000, scoped, tag = 'input window, operand 5, single buffered']
    #allocation9 [shape = 's32[1]{0}', space=sflag, size = 0x4, scoped, tag = 'scoped memory for tpu_custom_call.1']
    #allocation10 [shape = 'u8[294912]{0}', space=vmem, size = 0x48000, scoped, tag = 'input window, operand 7, single buffered']
    #allocation11 [shape = 'u8[24576]{0}', space=vmem, size = 0x6000, scoped, tag = 'output window, operand 0']
    %15 = vsyncpa [#allocation3], 0
    %s16 = scalar_lea.sflag [#allocation3], 1
    %17 = vsyncpa %s16, 0
    %18 = vsyncpa [#allocation6], 0
    %19 = vsyncpa [#allocation9], 0
    %20 = vsyncpa [#allocation4], 0
    %s21 = scalar_lea.sflag [#allocation4], 1
    %22 = vsyncpa %s21, 0
    loop: start=0, step=1, limit=4
    $region2: #{tpu_custom_call.1} parent=1 // loop_pre_header
      _
    $region3: #{tpu_custom_call.1} parent=1 // loop_header
      %s24 = sphi 0, %s28
      %p25 = scmp.ge.s32.totalorder %s24, 4
      %s34 = sphi 0, %s36
      %s37 = sphi 0, %s34
      %s38 = sphi 0, %s37
      %s54 = sphi 0, %s38
      %s58 = sphi 0, %s58
      %s60 = sphi 0, %s58
      %s61 = sphi 0, %s60
      %s75 = sphi 0, %s61
      %s79 = sphi 0, %s79
      %s81 = sphi 0, %s79
      %s82 = sphi 0, %s81
      %s96 = sphi 0, %s82
      %s100 = sphi 0, %s100
      %s102 = sphi 0, %s100
      %s103 = sphi 0, %s102
      %s117 = sphi 0, %s103
      %s121 = sphi 0, %s121
      %s123 = sphi 0, %s121
      %s124 = sphi 0, %s123
      %s138 = sphi 0, %s124
      %s142 = sphi 0, %s142
      %s144 = sphi 0, %s142
      %s145 = sphi 0, %s144
      %s159 = sphi 0, %s145
      %s163 = sphi 0, %s163
      %s165 = sphi 0, %s163
      %s166 = sphi 0, %s165
      %s180 = sphi 0, %s166
      %s184 = sphi 0, %s184
      %s186 = sphi 0, %s184
      %s187 = sphi 0, %s186
      %s201 = sphi 0, %s187
      %s205 = sphi 0, %s205
      %s207 = sphi 0, %s205
      %s208 = sphi 0, %s207
      %s222 = sphi 0, %s208
      %s228 = sphi 0, %s230
      %s231 = sphi 0, %s228
      %s232 = sphi 0, %s231
      %s248 = sphi 0, %s232
      %s254 = sphi 0, %s256
      %s257 = sphi 0, %s254
      %s258 = sphi 0, %s257
      %s274 = sphi 0, %s258
    $region4: #{tpu_custom_call.1} parent=1 // loop_header_branch
      %27 = sbr.rel (%p25) target = $region8
    $region5: #{tpu_custom_call.1} parent=1 // loop_body
      %s29 = ssub.s32 %s24, 1
      %s30 = ssub.s32 %s24, 2
      %s31 = sadd.s32 %s24, 1
      %s32 = ssub.s32 %s24, %s31
      %p33 = scmp.eq.s32.totalorder %s32, 0
      %s35 = sadd.s32 %s34, 1
      %s36 = scalar_select %p33, %s34, %s35
      %p39 = pneg %p33
      %p40 = scmp.eq.s32.totalorder %s24, 1
      %p41 = por %p39, %p40
      %p42 = scmp.ne.s32.totalorder %s34, %s37
      %p43 = scmp.eq.s32.totalorder %s24, 0
      %p44 = por %p42, %p43
      %p45 = scmp.ne.s32.totalorder %s34, %s37
      %p46 = scmp.eq.s32.totalorder %s29, 1
      %p47 = por %p45, %p46
      %p48 = scmp.ne.s32.totalorder %s37, %s38
      %p49 = scmp.eq.s32.totalorder %s29, 0
      %p50 = por %p48, %p49
      %p51 = scmp.ne.s32.totalorder %s37, %s38
      %p52 = scmp.eq.s32.totalorder %s30, 1
      %p53 = por %p51, %p52
      %p55 = scmp.ne.s32.totalorder %s38, %s54
      %p56 = scmp.eq.s32.totalorder %s30, 0
      %p57 = por %p55, %p56
      %s59 = sadd.s32 %s58, 1
      %p62 = scmp.eq.s32.totalorder %s24, 1
      %p63 = scmp.ne.s32.totalorder %s58, %s60
      %p64 = scmp.eq.s32.totalorder %s24, 0
      %p65 = por %p63, %p64
      %p66 = scmp.ne.s32.totalorder %s58, %s60
      %p67 = scmp.eq.s32.totalorder %s29, 1
      %p68 = por %p66, %p67
      %p69 = scmp.ne.s32.totalorder %s60, %s61
      %p70 = scmp.eq.s32.totalorder %s29, 0
      %p71 = por %p69, %p70
      %p72 = scmp.ne.s32.totalorder %s60, %s61
      %p73 = scmp.eq.s32.totalorder %s30, 1
      %p74 = por %p72, %p73
      %p76 = scmp.ne.s32.totalorder %s61, %s75
      %p77 = scmp.eq.s32.totalorder %s30, 0
      %p78 = por %p76, %p77
      %s80 = sadd.s32 %s79, 1
      %p83 = scmp.eq.s32.totalorder %s24, 1
      %p84 = scmp.ne.s32.totalorder %s79, %s81
      %p85 = scmp.eq.s32.totalorder %s24, 0
      %p86 = por %p84, %p85
      %p87 = scmp.ne.s32.totalorder %s79, %s81
      %p88 = scmp.eq.s32.totalorder %s29, 1
      %p89 = por %p87, %p88
      %p90 = scmp.ne.s32.totalorder %s81, %s82
      %p91 = scmp.eq.s32.totalorder %s29, 0
      %p92 = por %p90, %p91
      %p93 = scmp.ne.s32.totalorder %s81, %s82
      %p94 = scmp.eq.s32.totalorder %s30, 1
      %p95 = por %p93, %p94
      %p97 = scmp.ne.s32.totalorder %s82, %s96
      %p98 = scmp.eq.s32.totalorder %s30, 0
      %p99 = por %p97, %p98
      %s101 = sadd.s32 %s100, 1
      %p104 = scmp.eq.s32.totalorder %s24, 1
      %p105 = scmp.ne.s32.totalorder %s100, %s102
      %p106 = scmp.eq.s32.totalorder %s24, 0
      %p107 = por %p105, %p106
      %p108 = scmp.ne.s32.totalorder %s100, %s102
      %p109 = scmp.eq.s32.totalorder %s29, 1
      %p110 = por %p108, %p109
      %p111 = scmp.ne.s32.totalorder %s102, %s103
      %p112 = scmp.eq.s32.totalorder %s29, 0
      %p113 = por %p111, %p112
      %p114 = scmp.ne.s32.totalorder %s102, %s103
      %p115 = scmp.eq.s32.totalorder %s30, 1
      %p116 = por %p114, %p115
      %p118 = scmp.ne.s32.totalorder %s103, %s117
      %p119 = scmp.eq.s32.totalorder %s30, 0
      %p120 = por %p118, %p119
      %s122 = sadd.s32 %s121, 1
      %p125 = scmp.eq.s32.totalorder %s24, 1
      %p126 = scmp.ne.s32.totalorder %s121, %s123
      %p127 = scmp.eq.s32.totalorder %s24, 0
      %p128 = por %p126, %p127
      %p129 = scmp.ne.s32.totalorder %s121, %s123
      %p130 = scmp.eq.s32.totalorder %s29, 1
      %p131 = por %p129, %p130
      %p132 = scmp.ne.s32.totalorder %s123, %s124
      %p133 = scmp.eq.s32.totalorder %s29, 0
      %p134 = por %p132, %p133
      %p135 = scmp.ne.s32.totalorder %s123, %s124
      %p136 = scmp.eq.s32.totalorder %s30, 1
      %p137 = por %p135, %p136
      %p139 = scmp.ne.s32.totalorder %s124, %s138
      %p140 = scmp.eq.s32.totalorder %s30, 0
      %p141 = por %p139, %p140
      %s143 = sadd.s32 %s142, 1
      %p146 = scmp.eq.s32.totalorder %s24, 1
      %p147 = scmp.ne.s32.totalorder %s142, %s144
      %p148 = scmp.eq.s32.totalorder %s24, 0
      %p149 = por %p147, %p148
      %p150 = scmp.ne.s32.totalorder %s142, %s144
      %p151 = scmp.eq.s32.totalorder %s29, 1
      %p152 = por %p150, %p151
      %p153 = scmp.ne.s32.totalorder %s144, %s145
      %p154 = scmp.eq.s32.totalorder %s29, 0
      %p155 = por %p153, %p154
      %p156 = scmp.ne.s32.totalorder %s144, %s145
      %p157 = scmp.eq.s32.totalorder %s30, 1
      %p158 = por %p156, %p157
      %p160 = scmp.ne.s32.totalorder %s145, %s159
      %p161 = scmp.eq.s32.totalorder %s30, 0
      %p162 = por %p160, %p161
      %s164 = sadd.s32 %s163, 1
      %p167 = scmp.eq.s32.totalorder %s24, 1
      %p168 = scmp.ne.s32.totalorder %s163, %s165
      %p169 = scmp.eq.s32.totalorder %s24, 0
      %p170 = por %p168, %p169
      %p171 = scmp.ne.s32.totalorder %s163, %s165
      %p172 = scmp.eq.s32.totalorder %s29, 1
      %p173 = por %p171, %p172
      %p174 = scmp.ne.s32.totalorder %s165, %s166
      %p175 = scmp.eq.s32.totalorder %s29, 0
      %p176 = por %p174, %p175
      %p177 = scmp.ne.s32.totalorder %s165, %s166
      %p178 = scmp.eq.s32.totalorder %s30, 1
      %p179 = por %p177, %p178
      %p181 = scmp.ne.s32.totalorder %s166, %s180
      %p182 = scmp.eq.s32.totalorder %s30, 0
      %p183 = por %p181, %p182
      %s185 = sadd.s32 %s184, 1
      %p188 = scmp.eq.s32.totalorder %s24, 1
      %p189 = scmp.ne.s32.totalorder %s184, %s186
      %p190 = scmp.eq.s32.totalorder %s24, 0
      %p191 = por %p189, %p190
      %p192 = scmp.ne.s32.totalorder %s184, %s186
      %p193 = scmp.eq.s32.totalorder %s29, 1
      %p194 = por %p192, %p193
      %p195 = scmp.ne.s32.totalorder %s186, %s187
      %p196 = scmp.eq.s32.totalorder %s29, 0
      %p197 = por %p195, %p196
      %p198 = scmp.ne.s32.totalorder %s186, %s187
      %p199 = scmp.eq.s32.totalorder %s30, 1
      %p200 = por %p198, %p199
      %p202 = scmp.ne.s32.totalorder %s187, %s201
      %p203 = scmp.eq.s32.totalorder %s30, 0
      %p204 = por %p202, %p203
      %s206 = sadd.s32 %s205, 1
      %p209 = scmp.eq.s32.totalorder %s24, 1
      %p210 = scmp.ne.s32.totalorder %s205, %s207
      %p211 = scmp.eq.s32.totalorder %s24, 0
      %p212 = por %p210, %p211
      %p213 = scmp.ne.s32.totalorder %s205, %s207
      %p214 = scmp.eq.s32.totalorder %s29, 1
      %p215 = por %p213, %p214
      %p216 = scmp.ne.s32.totalorder %s207, %s208
      %p217 = scmp.eq.s32.totalorder %s29, 0
      %p218 = por %p216, %p217
      %p219 = scmp.ne.s32.totalorder %s207, %s208
      %p220 = scmp.eq.s32.totalorder %s30, 1
      %p221 = por %p219, %p220
      %p223 = scmp.ne.s32.totalorder %s208, %s222
      %p224 = scmp.eq.s32.totalorder %s30, 0
      %p225 = por %p223, %p224
      %s226 = ssub.s32 %s24, %s31
      %p227 = scmp.eq.s32.totalorder %s226, 0
      %s229 = sadd.s32 %s228, 1
      %s230 = scalar_select %p227, %s228, %s229
      %p233 = pneg %p227
      %p234 = scmp.eq.s32.totalorder %s24, 1
      %p235 = por %p233, %p234
      %p236 = scmp.ne.s32.totalorder %s228, %s231
      %p237 = scmp.eq.s32.totalorder %s24, 0
      %p238 = por %p236, %p237
      %p239 = scmp.ne.s32.totalorder %s228, %s231
      %p240 = scmp.eq.s32.totalorder %s29, 1
      %p241 = por %p239, %p240
      %p242 = scmp.ne.s32.totalorder %s231, %s232
      %p243 = scmp.eq.s32.totalorder %s29, 0
      %p244 = por %p242, %p243
      %p245 = scmp.ne.s32.totalorder %s231, %s232
      %p246 = scmp.eq.s32.totalorder %s30, 1
      %p247 = por %p245, %p246
      %p249 = scmp.ne.s32.totalorder %s232, %s248
      %p250 = scmp.eq.s32.totalorder %s30, 0
      %p251 = por %p249, %p250
      %s252 = ssub.s32 %s24, %s31
      %p253 = scmp.eq.s32.totalorder %s252, 0
      %s255 = sadd.s32 %s254, 1
      %s256 = scalar_select %p253, %s254, %s255
      %p259 = pneg %p253
      %p260 = scmp.eq.s32.totalorder %s24, 1
      %p261 = por %p259, %p260
      %p262 = scmp.ne.s32.totalorder %s254, %s257
      %p263 = scmp.eq.s32.totalorder %s24, 0
      %p264 = por %p262, %p263
      %p265 = scmp.ne.s32.totalorder %s254, %s257
      %p266 = scmp.eq.s32.totalorder %s29, 1
      %p267 = por %p265, %p266
      %p268 = scmp.ne.s32.totalorder %s257, %s258
      %p269 = scmp.eq.s32.totalorder %s29, 0
      %p270 = por %p268, %p269
      %p271 = scmp.ne.s32.totalorder %s257, %s258
      %p272 = scmp.eq.s32.totalorder %s30, 1
      %p273 = por %p271, %p272
      %p275 = scmp.ne.s32.totalorder %s258, %s274
      %p276 = scmp.eq.s32.totalorder %s30, 0
      %p277 = por %p275, %p276
      %p278 = scmp.le.s32.totalorder 1, %s24
      %p279 = scmp.lt.s32.totalorder %s24, 3
      %p280 = pnand %p278, %p279
      %p281 = pneg %p280
      // Predicated region
      $region9: #{tpu_custom_call.1} parent=5 // pred_check
        _
      $region10: #{tpu_custom_call.1} parent=5 // pred_check_branch
        %283 = sbr.rel (%p280) target = $region12
      $region11: #{tpu_custom_call.1} parent=5 // pred_region
        %s284 = ssub.s32 %s24, 1
        // Predicated region
        $region13: #{tpu_custom_call.1} parent=11 // pred_check
          %p285 = pneg %p71
        $region14: #{tpu_custom_call.1} parent=11 // pred_check_branch
          %287 = sbr.rel (%p285) target = $region16
        $region15: #{tpu_custom_call.1} parent=11 // pred_region
          %s289 = ssub.s32 9216, 9216
          %290 = vsyncadd [#allocation6], %s289
          %s291 = sshll.u32 [#allocation5], 4
          %s292 = int_to_ptr.vmem [resolvable:$true] %s291
          %297 = dma.hbm_to_vmem [thread:$0]  %s1, 9216, %s292, [#allocation6], 192, 192, 12
        $region16: #{tpu_custom_call.1} parent=11 // pred_fallthru
          _
        // Predicated region
        $region17: #{tpu_custom_call.1} parent=11 // pred_check
          %p298 = pneg %p92
        $region18: #{tpu_custom_call.1} parent=11 // pred_check_branch
          %300 = sbr.rel (%p298) target = $region20
        $region19: #{tpu_custom_call.1} parent=11 // pred_region
          _
        $region20: #{tpu_custom_call.1} parent=11 // pred_fallthru
          _
        // Predicated region
        $region21: #{tpu_custom_call.1} parent=11 // pred_check
          %p301 = pneg %p113
        $region22: #{tpu_custom_call.1} parent=11 // pred_check_branch
          %303 = sbr.rel (%p301) target = $region24
        $region23: #{tpu_custom_call.1} parent=11 // pred_region
          %s305 = ssub.s32 6144, 6144
          %306 = vsyncadd [#allocation6], %s305
          %s307 = sshll.u32 [#allocation7], 4
          %s308 = int_to_ptr.vmem [resolvable:$true] %s307
          %313 = dma.hbm_to_vmem [thread:$0]  %s3, 6144, %s308, [#allocation6], 128, 128, 8
        $region24: #{tpu_custom_call.1} parent=11 // pred_fallthru
          _
        // Predicated region
        $region25: #{tpu_custom_call.1} parent=11 // pred_check
          %p314 = pneg %p134
        $region26: #{tpu_custom_call.1} parent=11 // pred_check_branch
          %316 = sbr.rel (%p314) target = $region28
        $region27: #{tpu_custom_call.1} parent=11 // pred_region
          _
        $region28: #{tpu_custom_call.1} parent=11 // pred_fallthru
          _
        // Predicated region
        $region29: #{tpu_custom_call.1} parent=11 // pred_check
          %p317 = pneg %p155
        $region30: #{tpu_custom_call.1} parent=11 // pred_check_branch
          %319 = sbr.rel (%p317) target = $region32
        $region31: #{tpu_custom_call.1} parent=11 // pred_region
          %s321 = ssub.s32 3072, 3072
          %322 = vsyncadd [#allocation9], %s321
          %s323 = sshll.u32 [#allocation8], 4
          %s324 = int_to_ptr.vmem [resolvable:$true] %s323
          %329 = dma.hbm_to_vmem [thread:$0]  %s5, 3072, %s324, [#allocation9], 192, 192, 12
        $region32: #{tpu_custom_call.1} parent=11 // pred_fallthru
          _
        // Predicated region
        $region33: #{tpu_custom_call.1} parent=11 // pred_check
          %p330 = pneg %p176
        $region34: #{tpu_custom_call.1} parent=11 // pred_check_branch
          %332 = sbr.rel (%p330) target = $region36
        $region35: #{tpu_custom_call.1} parent=11 // pred_region
          _
        $region36: #{tpu_custom_call.1} parent=11 // pred_fallthru
          _
        // Predicated region
        $region37: #{tpu_custom_call.1} parent=11 // pred_check
          %p333 = pneg %p197
        $region38: #{tpu_custom_call.1} parent=11 // pred_check_branch
          %335 = sbr.rel (%p333) target = $region40
        $region39: #{tpu_custom_call.1} parent=11 // pred_region
          %s337 = ssub.s32 9216, 9216
          %338 = vsyncadd [#allocation9], %s337
          %s339 = sshll.u32 [#allocation10], 4
          %s340 = int_to_ptr.vmem [resolvable:$true] %s339
          %345 = dma.hbm_to_vmem [thread:$0]  %s7, 9216, %s340, [#allocation9], 192, 192, 12
        $region40: #{tpu_custom_call.1} parent=11 // pred_fallthru
          _
        // Predicated region
        $region41: #{tpu_custom_call.1} parent=11 // pred_check
          %p346 = pneg %p218
        $region42: #{tpu_custom_call.1} parent=11 // pred_check_branch
          %348 = sbr.rel (%p346) target = $region44
        $region43: #{tpu_custom_call.1} parent=11 // pred_region
          _
        $region44: #{tpu_custom_call.1} parent=11 // pred_fallthru
          _
      $region12: #{tpu_custom_call.1} parent=5 // pred_fallthru
        _
      %p349 = scmp.lt.s32.totalorder %s24, 2
      // Predicated region
      $region45: #{tpu_custom_call.1} parent=5 // pred_check
        %p350 = pneg %p349
      $region46: #{tpu_custom_call.1} parent=5 // pred_check_branch
        %352 = sbr.rel (%p350) target = $region48
      $region47: #{tpu_custom_call.1} parent=5 // pred_region
        // Predicated region
        $region49: #{tpu_custom_call.1} parent=47 // pred_check
          %p353 = pneg %p44
        $region50: #{tpu_custom_call.1} parent=47 // pred_check_branch
          %355 = sbr.rel (%p353) target = $region52
        $region51: #{tpu_custom_call.1} parent=47 // pred_region
          %s356 = sand.u32 %s34, 1
          %s357 = scalar_lea.sflag [#allocation3], %s356
          %s358 = sand.u32 %s34, 1
          %s359 = smul.addr %s358, 24
          %s360 = scalar_lea.vmem [#allocation2], %s359
          %s362 = ssub.s32 384, 384
          %363 = vsyncadd %s357, %s362
          %s364 = smul.addr %s24, 3
          %s365 = smul.addr %s364, 128
          %s366 = scalar_lea.hbm %s0, %s365
          %s368 = sshll.u32 %s360, 4
          %s369 = int_to_ptr.vmem [resolvable:$true] %s368
          %371 = dma.hbm_to_vmem [thread:$0]  %s366, 384, %s369, %s357
        $region52: #{tpu_custom_call.1} parent=47 // pred_fallthru
          _
        // Predicated region
        $region53: #{tpu_custom_call.1} parent=47 // pred_check
          %p372 = pneg %p238
        $region54: #{tpu_custom_call.1} parent=47 // pred_check_branch
          %374 = sbr.rel (%p372) target = $region56
        $region55: #{tpu_custom_call.1} parent=47 // pred_region
          %p375 = scmp.lt.s32.totalorder %s24, 1
          %s376 = scalar_select %p375, %s24, 1
          %s377 = smul.addr %s376, 8
          %s378 = scalar_lea.vmem %s9, %s377
        $region56: #{tpu_custom_call.1} parent=47 // pred_fallthru
          _
      $region48: #{tpu_custom_call.1} parent=5 // pred_fallthru
        _
      %p379 = scmp.le.s32.totalorder 1, %s24
      %p380 = scmp.lt.s32.totalorder %s24, 3
      %p381 = pnand %p379, %p380
      %p382 = pneg %p381
      // Predicated region
      $region57: #{tpu_custom_call.1} parent=5 // pred_check
        _
      $region58: #{tpu_custom_call.1} parent=5 // pred_check_branch
        %384 = sbr.rel (%p381) target = $region60
      $region59: #{tpu_custom_call.1} parent=5 // pred_region
        %s385 = ssub.s32 %s24, 1
        %s386 = sand.u32 %s37, 1
        %s387 = scalar_lea.sflag [#allocation3], %s386
        %s388 = sand.u32 %s37, 1
        %s389 = smul.addr %s388, 24
        %s390 = scalar_lea.vmem [#allocation2], %s389
        // Predicated region
        $region61: #{tpu_custom_call.1} parent=59 // pred_check
          %p391 = pneg %p50
        $region62: #{tpu_custom_call.1} parent=59 // pred_check_branch
          %393 = sbr.rel (%p391) target = $region64
        $region63: #{tpu_custom_call.1} parent=59 // pred_region
          %394 = dma.done %s387, 384
        $region64: #{tpu_custom_call.1} parent=59 // pred_fallthru
          _
        // Predicated region
        $region65: #{tpu_custom_call.1} parent=59 // pred_check
          %p395 = pneg %p71
        $region66: #{tpu_custom_call.1} parent=59 // pred_check_branch
          %397 = sbr.rel (%p395) target = $region68
        $region67: #{tpu_custom_call.1} parent=59 // pred_region
          %398 = dma.done [#allocation6], 9216
        $region68: #{tpu_custom_call.1} parent=59 // pred_fallthru
          _
        // Predicated region
        $region69: #{tpu_custom_call.1} parent=59 // pred_check
          %p399 = pneg %p113
        $region70: #{tpu_custom_call.1} parent=59 // pred_check_branch
          %401 = sbr.rel (%p399) target = $region72
        $region71: #{tpu_custom_call.1} parent=59 // pred_region
          %402 = dma.done [#allocation6], 6144
        $region72: #{tpu_custom_call.1} parent=59 // pred_fallthru
          _
        // Predicated region
        $region73: #{tpu_custom_call.1} parent=59 // pred_check
          %p403 = pneg %p155
        $region74: #{tpu_custom_call.1} parent=59 // pred_check_branch
          %405 = sbr.rel (%p403) target = $region76
        $region75: #{tpu_custom_call.1} parent=59 // pred_region
          %406 = dma.done [#allocation9], 3072
        $region76: #{tpu_custom_call.1} parent=59 // pred_fallthru
          _
        // Predicated region
        $region77: #{tpu_custom_call.1} parent=59 // pred_check
          %p407 = pneg %p197
        $region78: #{tpu_custom_call.1} parent=59 // pred_check_branch
          %409 = sbr.rel (%p407) target = $region80
        $region79: #{tpu_custom_call.1} parent=59 // pred_region
          %410 = dma.done [#allocation9], 9216
        $region80: #{tpu_custom_call.1} parent=59 // pred_fallthru
          _
        %s411 = sand.u32 %s37, 1
        %s412 = scalar_lea.sflag [#allocation3], %s411
        %s413 = sand.u32 %s37, 1
        %s414 = smul.addr %s413, 24
        %s415 = scalar_lea.vmem [#allocation2], %s414
        %p416 = pneg %p50
        %p417 = pneg %p47
        %p418 = pneg %p71
        %p419 = pneg %p68
        %p420 = pneg %p92
        %p421 = pneg %p89
        %p422 = pneg %p113
        %p423 = pneg %p110
        %p424 = pneg %p134
        %p425 = pneg %p131
        %p426 = pneg %p155
        %p427 = pneg %p152
        %p428 = pneg %p176
        %p429 = pneg %p173
        %p430 = pneg %p197
        %p431 = pneg %p194
        %p432 = pneg %p218
        %p433 = pneg %p215
        %p434 = scmp.lt.s32.totalorder %s29, 1
        %s435 = scalar_select %p434, %s29, 1
        %s436 = smul.addr %s435, 8
        %s437 = scalar_lea.vmem %s9, %s436
        %p438 = pneg %p244
        %p439 = pneg %p241
        %p440 = pneg %p270
        %p441 = pneg %p267
        %s442 = sand.u32 %s257, 1
        %s443 = scalar_lea.sflag [#allocation4], %s442
        %s444 = sand.u32 %s257, 1
        %s445 = smul.addr %s444, 24
        %s446 = scalar_lea.vmem [#allocation11], %s445
        %p447 = scmp.lt.s32.totalorder %s29, 1
        %s448 = scalar_select %p447, %s29, 1
        %s449 = smul.addr %s448, 8
        %s450 = scalar_lea.vmem %s9, %s449
        %v452 = vld [vmem:[%s390] sm:$0xff]
        %v453 = vld [vmem:[%s390 + $0x8] sm:$0xff]
        %v454 = vld [vmem:[%s390 + $0x10] sm:$0xff]
        %v455 = vpack.c.bf16 %v452, %v452
        %v456 = vpack.c.bf16 %v453, %v453
        %v457 = vpack.c.bf16 %v454, %v454
        %v458 = vld [vmem:[#allocation5] sm:$0xff]
        %v459 = vld [vmem:[#allocation5 + $0x8] sm:$0xf]
        %v460 = vld [vmem:[#allocation5 + $0xc] sm:$0xff]
        %v461 = vld [vmem:[#allocation5 + $0x14] sm:$0xf]
        %v462 = vld [vmem:[#allocation5 + $0x18] sm:$0xff]
        %v463 = vld [vmem:[#allocation5 + $0x20] sm:$0xf]
        %v464 = vld [vmem:[#allocation5 + $0x24] sm:$0xff]
        %v465 = vld [vmem:[#allocation5 + $0x2c] sm:$0xf]
        %v466 = vld [vmem:[#allocation5 + $0x30] sm:$0xff]
        %v467 = vld [vmem:[#allocation5 + $0x38] sm:$0xf]
        %v468 = vld [vmem:[#allocation5 + $0x3c] sm:$0xff]
        %v469 = vld [vmem:[#allocation5 + $0x44] sm:$0xf]
        %v470 = vld [vmem:[#allocation5 + $0x48] sm:$0xff]
        %v471 = vld [vmem:[#allocation5 + $0x50] sm:$0xf]
        %v472 = vld [vmem:[#allocation5 + $0x54] sm:$0xff]
        %v473 = vld [vmem:[#allocation5 + $0x5c] sm:$0xf]
        %v474 = vld [vmem:[#allocation5 + $0x60] sm:$0xff]
        %v475 = vld [vmem:[#allocation5 + $0x68] sm:$0xf]
        %v476 = vld [vmem:[#allocation5 + $0x6c] sm:$0xff]
        %v477 = vld [vmem:[#allocation5 + $0x74] sm:$0xf]
        %v478 = vld [vmem:[#allocation5 + $0x78] sm:$0xff]
        %v479 = vld [vmem:[#allocation5 + $0x80] sm:$0xf]
        %v480 = vld [vmem:[#allocation5 + $0x84] sm:$0xff]
        %v481 = vld [vmem:[#allocation5 + $0x8c] sm:$0xf]
        %v482 = vld [vmem:[#allocation5 + $0x90] sm:$0xff]
        %v483 = vld [vmem:[#allocation5 + $0x98] sm:$0xf]
        %v484 = vld [vmem:[#allocation5 + $0x9c] sm:$0xff]
        %v485 = vld [vmem:[#allocation5 + $0xa4] sm:$0xf]
        %v486 = vld [vmem:[#allocation5 + $0xa8] sm:$0xff]
        %v487 = vld [vmem:[#allocation5 + $0xb0] sm:$0xf]
        %v488 = vld [vmem:[#allocation5 + $0xb4] sm:$0xff]
        %v489 = vld [vmem:[#allocation5 + $0xbc] sm:$0xf]
        %v490 = vld [vmem:[#allocation5 + $0xc0] sm:$0xff]
        %v491 = vld [vmem:[#allocation5 + $0xc8] sm:$0xf]
        %v492 = vld [vmem:[#allocation5 + $0xcc] sm:$0xff]
        %v493 = vld [vmem:[#allocation5 + $0xd4] sm:$0xf]
        %v494 = vld [vmem:[#allocation5 + $0xd8] sm:$0xff]
        %v495 = vld [vmem:[#allocation5 + $0xe0] sm:$0xf]
        %v496 = vld [vmem:[#allocation5 + $0xe4] sm:$0xff]
        %v497 = vld [vmem:[#allocation5 + $0xec] sm:$0xf]
        %v498 = vld [vmem:[#allocation5 + $0xf0] sm:$0xff]
        %v499 = vld [vmem:[#allocation5 + $0xf8] sm:$0xf]
        %v500 = vld [vmem:[#allocation5 + $0xfc] sm:$0xff]
        %v501 = vld [vmem:[#allocation5 + $0x104] sm:$0xf]
        %v502 = vld [vmem:[#allocation5 + $0x108] sm:$0xff]
        %v503 = vld [vmem:[#allocation5 + $0x110] sm:$0xf]
        %v504 = vld [vmem:[#allocation5 + $0x114] sm:$0xff]
        %v505 = vld [vmem:[#allocation5 + $0x11c] sm:$0xf]
        %v506 = vld [vmem:[#allocation5 + $0x120] sm:$0xff]
        %v507 = vld [vmem:[#allocation5 + $0x128] sm:$0xf]
        %v508 = vld [vmem:[#allocation5 + $0x12c] sm:$0xff]
        %v509 = vld [vmem:[#allocation5 + $0x134] sm:$0xf]
        %v510 = vld [vmem:[#allocation5 + $0x138] sm:$0xff]
        %v511 = vld [vmem:[#allocation5 + $0x140] sm:$0xf]
        %v512 = vld [vmem:[#allocation5 + $0x144] sm:$0xff]
        %v513 = vld [vmem:[#allocation5 + $0x14c] sm:$0xf]
        %v514 = vld [vmem:[#allocation5 + $0x150] sm:$0xff]
        %v515 = vld [vmem:[#allocation5 + $0x158] sm:$0xf]
        %v516 = vld [vmem:[#allocation5 + $0x15c] sm:$0xff]
        %v517 = vld [vmem:[#allocation5 + $0x164] sm:$0xf]
        %v518 = vld [vmem:[#allocation5 + $0x168] sm:$0xff]
        %v519 = vld [vmem:[#allocation5 + $0x170] sm:$0xf]
        %v520 = vld [vmem:[#allocation5 + $0x174] sm:$0xff]
        %v521 = vld [vmem:[#allocation5 + $0x17c] sm:$0xf]
        %v522 = vld [vmem:[#allocation5 + $0x180] sm:$0xff]
        %v523 = vld [vmem:[#allocation5 + $0x188] sm:$0xf]
        %v524 = vld [vmem:[#allocation5 + $0x18c] sm:$0xff]
        %v525 = vld [vmem:[#allocation5 + $0x194] sm:$0xf]
        %v526 = vld [vmem:[#allocation5 + $0x198] sm:$0xff]
        %v527 = vld [vmem:[#allocation5 + $0x1a0] sm:$0xf]
        %v528 = vld [vmem:[#allocation5 + $0x1a4] sm:$0xff]
        %v529 = vld [vmem:[#allocation5 + $0x1ac] sm:$0xf]
        %v530 = vld [vmem:[#allocation5 + $0x1b0] sm:$0xff]
        %v531 = vld [vmem:[#allocation5 + $0x1b8] sm:$0xf]
        %v532 = vld [vmem:[#allocation5 + $0x1bc] sm:$0xff]
        %v533 = vld [vmem:[#allocation5 + $0x1c4] sm:$0xf]
        %v534 = vld [vmem:[#allocation5 + $0x1c8] sm:$0xff]
        %v535 = vld [vmem:[#allocation5 + $0x1d0] sm:$0xf]
        %v536 = vld [vmem:[#allocation5 + $0x1d4] sm:$0xff]
        %v537 = vld [vmem:[#allocation5 + $0x1dc] sm:$0xf]
        %v538 = vld [vmem:[#allocation5 + $0x1e0] sm:$0xff]
        %v539 = vld [vmem:[#allocation5 + $0x1e8] sm:$0xf]
        %v540 = vld [vmem:[#allocation5 + $0x1ec] sm:$0xff]
        %v541 = vld [vmem:[#allocation5 + $0x1f4] sm:$0xf]
        %v542 = vld [vmem:[#allocation5 + $0x1f8] sm:$0xff]
        %v543 = vld [vmem:[#allocation5 + $0x200] sm:$0xf]
        %v544 = vld [vmem:[#allocation5 + $0x204] sm:$0xff]
        %v545 = vld [vmem:[#allocation5 + $0x20c] sm:$0xf]
        %v546 = vld [vmem:[#allocation5 + $0x210] sm:$0xff]
        %v547 = vld [vmem:[#allocation5 + $0x218] sm:$0xf]
        %v548 = vld [vmem:[#allocation5 + $0x21c] sm:$0xff]
        %v549 = vld [vmem:[#allocation5 + $0x224] sm:$0xf]
        %v550 = vld [vmem:[#allocation5 + $0x228] sm:$0xff]
        %v551 = vld [vmem:[#allocation5 + $0x230] sm:$0xf]
        %v552 = vld [vmem:[#allocation5 + $0x234] sm:$0xff]
        %v553 = vld [vmem:[#allocation5 + $0x23c] sm:$0xf]
        %v554 = vld [vmem:[%s2] sm:$0x7]
        %v556 = vlaneseq
        %v557 = vshrl.u32 %v556, 7
        %v558 = vsub.s32 0, %v557
        %v559 = vrot.slane %v554, %v558
        %v560 = vlaneseq
        %v561 = vshrl.u32 %v560, 7
        %v562 = vsub.s32 1, %v561
        %v563 = vrot.slane %v554, %v562
        %v564 = vlaneseq
        %v565 = vshrl.u32 %v564, 7
        %v566 = vsub.s32 2, %v565
        %v567 = vrot.slane %v554, %v566
        %v667 = vunpack.c.l.b16 %v458
        %v668 = vunpack.c.h.b16 %v458
        %v669 = vunpack.c.l.b16 %v459
        %v670 = vunpack.c.l.b16 %v460
        %v671 = vunpack.c.h.b16 %v460
        %v672 = vunpack.c.l.b16 %v461
        %v673 = vunpack.c.l.b16 %v462
        %v674 = vunpack.c.h.b16 %v462
        %v675 = vunpack.c.l.b16 %v463
        %v676 = vunpack.c.l.b16 %v464
        %v677 = vunpack.c.h.b16 %v464
        %v678 = vunpack.c.l.b16 %v465
        %v679 = vunpack.c.l.b16 %v466
        %v680 = vunpack.c.h.b16 %v466
        %v681 = vunpack.c.l.b16 %v467
        %v682 = vunpack.c.l.b16 %v468
        %v683 = vunpack.c.h.b16 %v468
        %v684 = vunpack.c.l.b16 %v469
        %v685 = vunpack.c.l.b16 %v470
        %v686 = vunpack.c.h.b16 %v470
        %v687 = vunpack.c.l.b16 %v471
        %v688 = vunpack.c.l.b16 %v472
        %v689 = vunpack.c.h.b16 %v472
        %v690 = vunpack.c.l.b16 %v473
        %v691 = vunpack.c.l.b16 %v474
        %v692 = vunpack.c.h.b16 %v474
        %v693 = vunpack.c.l.b16 %v475
        %v694 = vunpack.c.l.b16 %v476
        %v695 = vunpack.c.h.b16 %v476
        %v696 = vunpack.c.l.b16 %v477
        %v697 = vunpack.c.l.b16 %v478
        %v698 = vunpack.c.h.b16 %v478
        %v699 = vunpack.c.l.b16 %v479
        %v700 = vunpack.c.l.b16 %v480
        %v701 = vunpack.c.h.b16 %v480
        %v702 = vunpack.c.l.b16 %v481
        %v703 = vunpack.c.l.b16 %v482
        %v704 = vunpack.c.h.b16 %v482
        %v705 = vunpack.c.l.b16 %v483
        %v706 = vunpack.c.l.b16 %v484
        %v707 = vunpack.c.h.b16 %v484
        %v708 = vunpack.c.l.b16 %v485
        %v709 = vunpack.c.l.b16 %v486
        %v710 = vunpack.c.h.b16 %v486
        %v711 = vunpack.c.l.b16 %v487
        %v712 = vunpack.c.l.b16 %v488
        %v713 = vunpack.c.h.b16 %v488
        %v714 = vunpack.c.l.b16 %v489
        %v715 = vunpack.c.l.b16 %v490
        %v716 = vunpack.c.h.b16 %v490
        %v717 = vunpack.c.l.b16 %v491
        %v718 = vunpack.c.l.b16 %v492
        %v719 = vunpack.c.h.b16 %v492
        %v720 = vunpack.c.l.b16 %v493
        %v721 = vunpack.c.l.b16 %v494
        %v722 = vunpack.c.h.b16 %v494
        %v723 = vunpack.c.l.b16 %v495
        %v724 = vunpack.c.l.b16 %v496
        %v725 = vunpack.c.h.b16 %v496
        %v726 = vunpack.c.l.b16 %v497
        %v727 = vunpack.c.l.b16 %v498
        %v728 = vunpack.c.h.b16 %v498
        %v729 = vunpack.c.l.b16 %v499
        %v730 = vunpack.c.l.b16 %v500
        %v731 = vunpack.c.h.b16 %v500
        %v732 = vunpack.c.l.b16 %v501
        %v733 = vunpack.c.l.b16 %v502
        %v734 = vunpack.c.h.b16 %v502
        %v735 = vunpack.c.l.b16 %v503
        %v736 = vunpack.c.l.b16 %v504
        %v737 = vunpack.c.h.b16 %v504
        %v738 = vunpack.c.l.b16 %v505
        %v739 = vunpack.c.l.b16 %v506
        %v740 = vunpack.c.h.b16 %v506
        %v741 = vunpack.c.l.b16 %v507
        %v742 = vunpack.c.l.b16 %v508
        %v743 = vunpack.c.h.b16 %v508
        %v744 = vunpack.c.l.b16 %v509
        %v745 = vunpack.c.l.b16 %v510
        %v746 = vunpack.c.h.b16 %v510
        %v747 = vunpack.c.l.b16 %v511
        %v748 = vunpack.c.l.b16 %v512
        %v749 = vunpack.c.h.b16 %v512
        %v750 = vunpack.c.l.b16 %v513
        %v751 = vunpack.c.l.b16 %v514
        %v752 = vunpack.c.h.b16 %v514
        %v753 = vunpack.c.l.b16 %v515
        %v754 = vunpack.c.l.b16 %v516
        %v755 = vunpack.c.h.b16 %v516
        %v756 = vunpack.c.l.b16 %v517
        %v757 = vunpack.c.l.b16 %v518
        %v758 = vunpack.c.h.b16 %v518
        %v759 = vunpack.c.l.b16 %v519
        %v760 = vunpack.c.l.b16 %v520
        %v761 = vunpack.c.h.b16 %v520
        %v762 = vunpack.c.l.b16 %v521
        %v763 = vunpack.c.l.b16 %v522
        %v764 = vunpack.c.h.b16 %v522
        %v765 = vunpack.c.l.b16 %v523
        %v766 = vunpack.c.l.b16 %v524
        %v767 = vunpack.c.h.b16 %v524
        %v768 = vunpack.c.l.b16 %v525
        %v769 = vunpack.c.l.b16 %v526
        %v770 = vunpack.c.h.b16 %v526
        %v771 = vunpack.c.l.b16 %v527
        %v772 = vunpack.c.l.b16 %v528
        %v773 = vunpack.c.h.b16 %v528
        %v774 = vunpack.c.l.b16 %v529
        %v775 = vunpack.c.l.b16 %v530
        %v776 = vunpack.c.h.b16 %v530
        %v777 = vunpack.c.l.b16 %v531
        %v778 = vunpack.c.l.b16 %v532
        %v779 = vunpack.c.h.b16 %v532
        %v780 = vunpack.c.l.b16 %v533
        %v781 = vunpack.c.l.b16 %v534
        %v782 = vunpack.c.h.b16 %v534
        %v783 = vunpack.c.l.b16 %v535
        %v784 = vunpack.c.l.b16 %v536
        %v785 = vunpack.c.h.b16 %v536
        %v786 = vunpack.c.l.b16 %v537
        %v787 = vunpack.c.l.b16 %v538
        %v788 = vunpack.c.h.b16 %v538
        %v789 = vunpack.c.l.b16 %v539
        %v790 = vunpack.c.l.b16 %v540
        %v791 = vunpack.c.h.b16 %v540
        %v792 = vunpack.c.l.b16 %v541
        %v793 = vunpack.c.l.b16 %v542
        %v794 = vunpack.c.h.b16 %v542
        %v795 = vunpack.c.l.b16 %v543
        %v796 = vunpack.c.l.b16 %v544
        %v797 = vunpack.c.h.b16 %v544
        %v798 = vunpack.c.l.b16 %v545
        %v799 = vunpack.c.l.b16 %v546
        %v800 = vunpack.c.h.b16 %v546
        %v801 = vunpack.c.l.b16 %v547
        %v802 = vunpack.c.l.b16 %v548
        %v803 = vunpack.c.h.b16 %v548
        %v804 = vunpack.c.l.b16 %v549
        %v805 = vunpack.c.l.b16 %v550
        %v806 = vunpack.c.h.b16 %v550
        %v807 = vunpack.c.l.b16 %v551
        %v808 = vunpack.c.l.b16 %v552
        %v809 = vunpack.c.h.b16 %v552
        %v810 = vunpack.c.l.b16 %v553
        %v811 = vpack.c.b16 %v670, %v667
        %v812 = vpack.c.b16 %v671, %v668
        %v813 = vpack.c.b16 %v672, %v669
        %v814 = vpack.c.b16 %v676, %v673
        %v815 = vpack.c.b16 %v677, %v674
        %v816 = vpack.c.b16 %v678, %v675
        %v817 = vpack.c.b16 %v682, %v679
        %v818 = vpack.c.b16 %v683, %v680
        %v819 = vpack.c.b16 %v684, %v681
        %v820 = vpack.c.b16 %v688, %v685
        %v821 = vpack.c.b16 %v689, %v686
        %v822 = vpack.c.b16 %v690, %v687
        %v823 = vpack.c.b16 %v694, %v691
        %v824 = vpack.c.b16 %v695, %v692
        %v825 = vpack.c.b16 %v696, %v693
        %v826 = vpack.c.b16 %v700, %v697
        %v827 = vpack.c.b16 %v701, %v698
        %v828 = vpack.c.b16 %v702, %v699
        %v829 = vpack.c.b16 %v706, %v703
        %v830 = vpack.c.b16 %v707, %v704
        %v831 = vpack.c.b16 %v708, %v705
        %v832 = vpack.c.b16 %v712, %v709
        %v833 = vpack.c.b16 %v713, %v710
        %v834 = vpack.c.b16 %v714, %v711
        %v835 = vpack.c.b16 %v718, %v715
        %v836 = vpack.c.b16 %v719, %v716
        %v837 = vpack.c.b16 %v720, %v717
        %v838 = vpack.c.b16 %v724, %v721
        %v839 = vpack.c.b16 %v725, %v722
        %v840 = vpack.c.b16 %v726, %v723
        %v841 = vpack.c.b16 %v730, %v727
        %v842 = vpack.c.b16 %v731, %v728
        %v843 = vpack.c.b16 %v732, %v729
        %v844 = vpack.c.b16 %v736, %v733
        %v845 = vpack.c.b16 %v737, %v734
        %v846 = vpack.c.b16 %v738, %v735
        %v847 = vpack.c.b16 %v742, %v739
        %v848 = vpack.c.b16 %v743, %v740
        %v849 = vpack.c.b16 %v744, %v741
        %v850 = vpack.c.b16 %v748, %v745
        %v851 = vpack.c.b16 %v749, %v746
        %v852 = vpack.c.b16 %v750, %v747
        %v853 = vpack.c.b16 %v754, %v751
        %v854 = vpack.c.b16 %v755, %v752
        %v855 = vpack.c.b16 %v756, %v753
        %v856 = vpack.c.b16 %v760, %v757
        %v857 = vpack.c.b16 %v761, %v758
        %v858 = vpack.c.b16 %v762, %v759
        %v859 = vpack.c.b16 %v766, %v763
        %v860 = vpack.c.b16 %v767, %v764
        %v861 = vpack.c.b16 %v768, %v765
        %v862 = vpack.c.b16 %v772, %v769
        %v863 = vpack.c.b16 %v773, %v770
        %v864 = vpack.c.b16 %v774, %v771
        %v865 = vpack.c.b16 %v778, %v775
        %v866 = vpack.c.b16 %v779, %v776
        %v867 = vpack.c.b16 %v780, %v777
        %v868 = vpack.c.b16 %v784, %v781
        %v869 = vpack.c.b16 %v785, %v782
        %v870 = vpack.c.b16 %v786, %v783
        %v871 = vpack.c.b16 %v790, %v787
        %v872 = vpack.c.b16 %v791, %v788
        %v873 = vpack.c.b16 %v792, %v789
        %v874 = vpack.c.b16 %v796, %v793
        %v875 = vpack.c.b16 %v797, %v794
        %v876 = vpack.c.b16 %v798, %v795
        %v877 = vpack.c.b16 %v802, %v799
        %v878 = vpack.c.b16 %v803, %v800
        %v879 = vpack.c.b16 %v804, %v801
        %v880 = vpack.c.b16 %v808, %v805
        %v881 = vpack.c.b16 %v809, %v806
        %v882 = vpack.c.b16 %v810, %v807
        %955 = vmatprep.subr.bf16.mxu0 %v812
        %956 = vmatpush1.bf16.msra.mxu0 %v811
        %957 = vmatprep.subr.bf16.mxu0 %v815
        %958 = vmatpush1.bf16.msra.mxu0 %v814
        %959 = vmatprep.subr.bf16.mxu0 %v818
        %960 = vmatpush1.bf16.msra.mxu0 %v817
        %961 = vmatprep.subr.bf16.mxu0 %v821
        %962 = vmatpush1.bf16.msra.mxu0 %v820
        %963 = vmatprep.subr.bf16.mxu0 %v824
        %964 = vmatpush1.bf16.msra.mxu0 %v823
        %965 = vmatprep.subr.bf16.mxu0 %v827
        %966 = vmatpush1.bf16.msra.mxu0 %v826
        %967 = vmatprep.subr.bf16.mxu0 %v830
        %968 = vmatpush1.bf16.msra.mxu0 %v829
        %969 = vmatprep.subr.bf16.mxu0 %v833
        %970 = vmatpush1.bf16.msra.mxu0 %v832
        %971 = vmatprep.subr.bf16.mxu0 %v836
        %972 = vmatpush1.bf16.msra.mxu0 %v835
        %973 = vmatprep.subr.bf16.mxu0 %v839
        %974 = vmatpush1.bf16.msra.mxu0 %v838
        %975 = vmatprep.subr.bf16.mxu0 %v842
        %976 = vmatpush1.bf16.msra.mxu0 %v841
        %977 = vmatprep.subr.bf16.mxu0 %v845
        %978 = vmatpush1.bf16.msra.mxu0 %v844
        %979 = vmatprep.subr.bf16.mxu0 %v848
        %980 = vmatpush1.bf16.msra.mxu0 %v847
        %981 = vmatprep.subr.bf16.mxu0 %v851
        %982 = vmatpush1.bf16.msra.mxu0 %v850
        %983 = vmatprep.subr.bf16.mxu0 %v854
        %984 = vmatpush1.bf16.msra.mxu0 %v853
        %985 = vmatprep.subr.bf16.mxu0 %v857
        %986 = vmatpush1.bf16.msra.mxu0 %v856
        %987 = vmatprep.mubr.bf16.mxu0 %v456
        %988 = vmatmul.mubr.bf16.gmra.mrb[0].mxu0 %v455
        %v989 = vpop.f32.mrb[0].mxu0
        %v990 = vadd.f32 %v559, %v989
        %v991 = vpop.f32.mrb[0].mxu0
        %v992 = vadd.f32 %v563, %v991
        %v993 = vpop.f32.mrb[0].mxu0
        %v994 = vpop.f32.mrb[0].mxu0
        %995 = vdwg.mxu0
        %996 = vmatprep.subr.bf16.mxu0 %v860
        %997 = vmatpush1.bf16.msra.mxu0 %v859
        %998 = vmatprep.subr.bf16.mxu0 %v863
        %999 = vmatpush1.bf16.msra.mxu0 %v862
        %1000 = vmatprep.subr.bf16.mxu0 %v866
        %1001 = vmatpush1.bf16.msra.mxu0 %v865
        %1002 = vmatprep.subr.bf16.mxu0 %v869
        %1003 = vmatpush1.bf16.msra.mxu0 %v868
        %1004 = vmatprep.subr.bf16.mxu0 %v872
        %1005 = vmatpush1.bf16.msra.mxu0 %v871
        %1006 = vmatprep.subr.bf16.mxu0 %v875
        %1007 = vmatpush1.bf16.msra.mxu0 %v874
        %1008 = vmatprep.subr.bf16.mxu0 %v878
        %1009 = vmatpush1.bf16.msra.mxu0 %v877
        %1010 = vmatprep.subr.bf16.mxu0 %v881
        %1011 = vmatpush1.bf16.msra.mxu0 %v880
        %1012 = vmatprep.subr.bf16.mxu0 0
        %1013 = vmatpush1.bf16.msra.mxu0 0
        %1014 = vmatprep.subr.bf16.mxu0 0
        %1015 = vmatpush1.bf16.msra.mxu0 0
        %1016 = vmatprep.subr.bf16.mxu0 0
        %1017 = vmatpush1.bf16.msra.mxu0 0
        %1018 = vmatprep.subr.bf16.mxu0 0
        %1019 = vmatpush1.bf16.msra.mxu0 0
        %1020 = vmatprep.subr.bf16.mxu0 0
        %1021 = vmatpush1.bf16.msra.mxu0 0
        %1022 = vmatprep.subr.bf16.mxu0 0
        %1023 = vmatpush1.bf16.msra.mxu0 0
        %1024 = vmatprep.subr.bf16.mxu0 0
        %1025 = vmatpush1.bf16.msra.mxu0 0
        %1026 = vmatprep.subr.bf16.mxu0 0
        %1027 = vmatpush1.bf16.msra.mxu0 0
        %1028 = vmatprep.mubr.bf16.mxu0 0
        %1029 = vmatmul.mubr.bf16.gmra.mrb[0].mxu0 %v457
        %v1030 = vpop.f32.mrb[0].mxu0
        %v1031 = vadd.f32 %v990, %v1030
        %v1032 = vpop.f32.mrb[0].mxu0
        %v1033 = vadd.f32 %v992, %v1032
        %v1034 = vpop.f32.mrb[0].mxu0
        %v1035 = vpop.f32.mrb[0].mxu0
        %1036 = vdwg.mxu0
        %1037 = vmatprep.subr.bf16.mxu0 0
        %1038 = vmatpush1.bf16.msra.mxu0 %v813
        %1039 = vmatprep.subr.bf16.mxu0 0
        %1040 = vmatpush1.bf16.msra.mxu0 %v816
        %1041 = vmatprep.subr.bf16.mxu0 0
        %1042 = vmatpush1.bf16.msra.mxu0 %v819
        %1043 = vmatprep.subr.bf16.mxu0 0
        %1044 = vmatpush1.bf16.msra.mxu0 %v822
        %1045 = vmatprep.subr.bf16.mxu0 0
        %1046 = vmatpush1.bf16.msra.mxu0 %v825
        %1047 = vmatprep.subr.bf16.mxu0 0
        %1048 = vmatpush1.bf16.msra.mxu0 %v828
        %1049 = vmatprep.subr.bf16.mxu0 0
        %1050 = vmatpush1.bf16.msra.mxu0 %v831
        %1051 = vmatprep.subr.bf16.mxu0 0
        %1052 = vmatpush1.bf16.msra.mxu0 %v834
        %1053 = vmatprep.subr.bf16.mxu0 0
        %1054 = vmatpush1.bf16.msra.mxu0 %v837
        %1055 = vmatprep.subr.bf16.mxu0 0
        %1056 = vmatpush1.bf16.msra.mxu0 %v840
        %1057 = vmatprep.subr.bf16.mxu0 0
        %1058 = vmatpush1.bf16.msra.mxu0 %v843
        %1059 = vmatprep.subr.bf16.mxu0 0
        %1060 = vmatpush1.bf16.msra.mxu0 %v846
        %1061 = vmatprep.subr.bf16.mxu0 0
        %1062 = vmatpush1.bf16.msra.mxu0 %v849
        %1063 = vmatprep.subr.bf16.mxu0 0
        %1064 = vmatpush1.bf16.msra.mxu0 %v852
        %1065 = vmatprep.subr.bf16.mxu0 0
        %1066 = vmatpush1.bf16.msra.mxu0 %v855
        %1067 = vmatprep.subr.bf16.mxu0 0
        %1068 = vmatpush1.bf16.msra.mxu0 %v858
        %1069 = vmatprep.mubr.bf16.mxu0 %v456
        %1070 = vmatmul.mubr.bf16.gmra.mrb[0].mxu0 %v455
        %v1071 = vpop.f32.mrb[0].mxu0
        %v1072 = vadd.f32 %v567, %v1071
        %v1073 = vpop.f32.mrb[0].mxu0
        %v1074 = vpop.f32.mrb[0].mxu0
        %v1075 = vpop.f32.mrb[0].mxu0
        %1076 = vdwg.mxu0
        %1077 = vmatprep.subr.bf16.mxu0 0
        %1078 = vmatpush1.bf16.msra.mxu0 %v861
        %1079 = vmatprep.subr.bf16.mxu0 0
        %1080 = vmatpush1.bf16.msra.mxu0 %v864
        %1081 = vmatprep.subr.bf16.mxu0 0
        %1082 = vmatpush1.bf16.msra.mxu0 %v867
        %1083 = vmatprep.subr.bf16.mxu0 0
        %1084 = vmatpush1.bf16.msra.mxu0 %v870
        %1085 = vmatprep.subr.bf16.mxu0 0
        %1086 = vmatpush1.bf16.msra.mxu0 %v873
        %1087 = vmatprep.subr.bf16.mxu0 0
        %1088 = vmatpush1.bf16.msra.mxu0 %v876
        %1089 = vmatprep.subr.bf16.mxu0 0
        %1090 = vmatpush1.bf16.msra.mxu0 %v879
        %1091 = vmatprep.subr.bf16.mxu0 0
        %1092 = vmatpush1.bf16.msra.mxu0 %v882
        %1093 = vmatprep.subr.bf16.mxu0 0
        %1094 = vmatpush1.bf16.msra.mxu0 0
        %1095 = vmatprep.subr.bf16.mxu0 0
        %1096 = vmatpush1.bf16.msra.mxu0 0
        %1097 = vmatprep.subr.bf16.mxu0 0
        %1098 = vmatpush1.bf16.msra.mxu0 0
        %1099 = vmatprep.subr.bf16.mxu0 0
        %1100 = vmatpush1.bf16.msra.mxu0 0
        %1101 = vmatprep.subr.bf16.mxu0 0
        %1102 = vmatpush1.bf16.msra.mxu0 0
        %1103 = vmatprep.subr.bf16.mxu0 0
        %1104 = vmatpush1.bf16.msra.mxu0 0
        %1105 = vmatprep.subr.bf16.mxu0 0
        %1106 = vmatpush1.bf16.msra.mxu0 0
        %1107 = vmatprep.subr.bf16.mxu0 0
        %1108 = vmatpush1.bf16.msra.mxu0 0
        %1109 = vmatprep.mubr.bf16.mxu0 0
        %1110 = vmatmul.mubr.bf16.gmra.mrb[0].mxu0 %v457
        %v1111 = vpop.f32.mrb[0].mxu0
        %v1112 = vadd.f32 %v1072, %v1111
        %v1113 = vpop.f32.mrb[0].mxu0
        %v1114 = vpop.f32.mrb[0].mxu0
        %v1115 = vpop.f32.mrb[0].mxu0
        %1116 = vdwg.mxu0
        %v1117 = vmax.f32 %v1031, 0.0
        %v1118 = vmax.f32 %v1033, 0.0
        %v1119 = vmax.f32 %v1112, 0.0
        %v1120 = vpack.c.bf16 %v1117, %v1117
        %v1121 = vpack.c.bf16 %v1118, %v1118
        %v1122 = vpack.c.bf16 %v1119, %v1119
        %v1123 = vld [vmem:[#allocation7] sm:$0xff]
        %v1124 = vld [vmem:[#allocation7 + $0x8] sm:$0xff]
        %v1125 = vld [vmem:[#allocation7 + $0x10] sm:$0xff]
        %v1126 = vld [vmem:[#allocation7 + $0x18] sm:$0xff]
        %v1127 = vld [vmem:[#allocation7 + $0x20] sm:$0xff]
        %v1128 = vld [vmem:[#allocation7 + $0x28] sm:$0xff]
        %v1129 = vld [vmem:[#allocation7 + $0x30] sm:$0xff]
        %v1130 = vld [vmem:[#allocation7 + $0x38] sm:$0xff]
        %v1131 = vld [vmem:[#allocation7 + $0x40] sm:$0xff]
        %v1132 = vld [vmem:[#allocation7 + $0x48] sm:$0xff]
        %v1133 = vld [vmem:[#allocation7 + $0x50] sm:$0xff]
        %v1134 = vld [vmem:[#allocation7 + $0x58] sm:$0xff]
        %v1135 = vld [vmem:[#allocation7 + $0x60] sm:$0xff]
        %v1136 = vld [vmem:[#allocation7 + $0x68] sm:$0xff]
        %v1137 = vld [vmem:[#allocation7 + $0x70] sm:$0xff]
        %v1138 = vld [vmem:[#allocation7 + $0x78] sm:$0xff]
        %v1139 = vld [vmem:[#allocation7 + $0x80] sm:$0xff]
        %v1140 = vld [vmem:[#allocation7 + $0x88] sm:$0xff]
        %v1141 = vld [vmem:[#allocation7 + $0x90] sm:$0xff]
        %v1142 = vld [vmem:[#allocation7 + $0x98] sm:$0xff]
        %v1143 = vld [vmem:[#allocation7 + $0xa0] sm:$0xff]
        %v1144 = vld [vmem:[#allocation7 + $0xa8] sm:$0xff]
        %v1145 = vld [vmem:[#allocation7 + $0xb0] sm:$0xff]
        %v1146 = vld [vmem:[#allocation7 + $0xb8] sm:$0xff]
        %v1147 = vld [vmem:[#allocation7 + $0xc0] sm:$0xff]
        %v1148 = vld [vmem:[#allocation7 + $0xc8] sm:$0xff]
        %v1149 = vld [vmem:[#allocation7 + $0xd0] sm:$0xff]
        %v1150 = vld [vmem:[#allocation7 + $0xd8] sm:$0xff]
        %v1151 = vld [vmem:[#allocation7 + $0xe0] sm:$0xff]
        %v1152 = vld [vmem:[#allocation7 + $0xe8] sm:$0xff]
        %v1153 = vld [vmem:[#allocation7 + $0xf0] sm:$0xff]
        %v1154 = vld [vmem:[#allocation7 + $0xf8] sm:$0xff]
        %v1155 = vld [vmem:[#allocation7 + $0x100] sm:$0xff]
        %v1156 = vld [vmem:[#allocation7 + $0x108] sm:$0xff]
        %v1157 = vld [vmem:[#allocation7 + $0x110] sm:$0xff]
        %v1158 = vld [vmem:[#allocation7 + $0x118] sm:$0xff]
        %v1159 = vld [vmem:[#allocation7 + $0x120] sm:$0xff]
        %v1160 = vld [vmem:[#allocation7 + $0x128] sm:$0xff]
        %v1161 = vld [vmem:[#allocation7 + $0x130] sm:$0xff]
        %v1162 = vld [vmem:[#allocation7 + $0x138] sm:$0xff]
        %v1163 = vld [vmem:[#allocation7 + $0x140] sm:$0xff]
        %v1164 = vld [vmem:[#allocation7 + $0x148] sm:$0xff]
        %v1165 = vld [vmem:[#allocation7 + $0x150] sm:$0xff]
        %v1166 = vld [vmem:[#allocation7 + $0x158] sm:$0xff]
        %v1167 = vld [vmem:[#allocation7 + $0x160] sm:$0xff]
        %v1168 = vld [vmem:[#allocation7 + $0x168] sm:$0xff]
        %v1169 = vld [vmem:[#allocation7 + $0x170] sm:$0xff]
        %v1170 = vld [vmem:[#allocation7 + $0x178] sm:$0xff]
        %v1171 = vld [vmem:[%s4] sm:$0x3]
        %v1173 = vlaneseq
        %v1174 = vshrl.u32 %v1173, 7
        %v1175 = vsub.s32 0, %v1174
        %v1176 = vrot.slane %v1171, %v1175
        %v1177 = vlaneseq
        %v1178 = vshrl.u32 %v1177, 7
        %v1179 = vsub.s32 1, %v1178
        %v1180 = vrot.slane %v1171, %v1179
        %v1231 = vunpack.c.l.b16 %v1123
        %v1232 = vunpack.c.h.b16 %v1123
        %v1233 = vunpack.c.l.b16 %v1124
        %v1234 = vunpack.c.h.b16 %v1124
        %v1235 = vunpack.c.l.b16 %v1125
        %v1236 = vunpack.c.h.b16 %v1125
        %v1237 = vunpack.c.l.b16 %v1126
        %v1238 = vunpack.c.h.b16 %v1126
        %v1239 = vunpack.c.l.b16 %v1127
        %v1240 = vunpack.c.h.b16 %v1127
        %v1241 = vunpack.c.l.b16 %v1128
        %v1242 = vunpack.c.h.b16 %v1128
        %v1243 = vunpack.c.l.b16 %v1129
        %v1244 = vunpack.c.h.b16 %v1129
        %v1245 = vunpack.c.l.b16 %v1130
        %v1246 = vunpack.c.h.b16 %v1130
        %v1247 = vunpack.c.l.b16 %v1131
        %v1248 = vunpack.c.h.b16 %v1131
        %v1249 = vunpack.c.l.b16 %v1132
        %v1250 = vunpack.c.h.b16 %v1132
        %v1251 = vunpack.c.l.b16 %v1133
        %v1252 = vunpack.c.h.b16 %v1133
        %v1253 = vunpack.c.l.b16 %v1134
        %v1254 = vunpack.c.h.b16 %v1134
        %v1255 = vunpack.c.l.b16 %v1135
        %v1256 = vunpack.c.h.b16 %v1135
        %v1257 = vunpack.c.l.b16 %v1136
        %v1258 = vunpack.c.h.b16 %v1136
        %v1259 = vunpack.c.l.b16 %v1137
        %v1260 = vunpack.c.h.b16 %v1137
        %v1261 = vunpack.c.l.b16 %v1138
        %v1262 = vunpack.c.h.b16 %v1138
        %v1263 = vunpack.c.l.b16 %v1139
        %v1264 = vunpack.c.h.b16 %v1139
        %v1265 = vunpack.c.l.b16 %v1140
        %v1266 = vunpack.c.h.b16 %v1140
        %v1267 = vunpack.c.l.b16 %v1141
        %v1268 = vunpack.c.h.b16 %v1141
        %v1269 = vunpack.c.l.b16 %v1142
        %v1270 = vunpack.c.h.b16 %v1142
        %v1271 = vunpack.c.l.b16 %v1143
        %v1272 = vunpack.c.h.b16 %v1143
        %v1273 = vunpack.c.l.b16 %v1144
        %v1274 = vunpack.c.h.b16 %v1144
        %v1275 = vunpack.c.l.b16 %v1145
        %v1276 = vunpack.c.h.b16 %v1145
        %v1277 = vunpack.c.l.b16 %v1146
        %v1278 = vunpack.c.h.b16 %v1146
        %v1279 = vunpack.c.l.b16 %v1147
        %v1280 = vunpack.c.h.b16 %v1147
        %v1281 = vunpack.c.l.b16 %v1148
        %v1282 = vunpack.c.h.b16 %v1148
        %v1283 = vunpack.c.l.b16 %v1149
        %v1284 = vunpack.c.h.b16 %v1149
        %v1285 = vunpack.c.l.b16 %v1150
        %v1286 = vunpack.c.h.b16 %v1150
        %v1287 = vunpack.c.l.b16 %v1151
        %v1288 = vunpack.c.h.b16 %v1151
        %v1289 = vunpack.c.l.b16 %v1152
        %v1290 = vunpack.c.h.b16 %v1152
        %v1291 = vunpack.c.l.b16 %v1153
        %v1292 = vunpack.c.h.b16 %v1153
        %v1293 = vunpack.c.l.b16 %v1154
        %v1294 = vunpack.c.h.b16 %v1154
        %v1295 = vunpack.c.l.b16 %v1155
        %v1296 = vunpack.c.h.b16 %v1155
        %v1297 = vunpack.c.l.b16 %v1156
        %v1298 = vunpack.c.h.b16 %v1156
        %v1299 = vunpack.c.l.b16 %v1157
        %v1300 = vunpack.c.h.b16 %v1157
        %v1301 = vunpack.c.l.b16 %v1158
        %v1302 = vunpack.c.h.b16 %v1158
        %v1303 = vunpack.c.l.b16 %v1159
        %v1304 = vunpack.c.h.b16 %v1159
        %v1305 = vunpack.c.l.b16 %v1160
        %v1306 = vunpack.c.h.b16 %v1160
        %v1307 = vunpack.c.l.b16 %v1161
        %v1308 = vunpack.c.h.b16 %v1161
        %v1309 = vunpack.c.l.b16 %v1162
        %v1310 = vunpack.c.h.b16 %v1162
        %v1311 = vunpack.c.l.b16 %v1163
        %v1312 = vunpack.c.h.b16 %v1163
        %v1313 = vunpack.c.l.b16 %v1164
        %v1314 = vunpack.c.h.b16 %v1164
        %v1315 = vunpack.c.l.b16 %v1165
        %v1316 = vunpack.c.h.b16 %v1165
        %v1317 = vunpack.c.l.b16 %v1166
        %v1318 = vunpack.c.h.b16 %v1166
        %v1319 = vunpack.c.l.b16 %v1167
        %v1320 = vunpack.c.h.b16 %v1167
        %v1321 = vunpack.c.l.b16 %v1168
        %v1322 = vunpack.c.h.b16 %v1168
        %v1323 = vunpack.c.l.b16 %v1169
        %v1324 = vunpack.c.h.b16 %v1169
        %v1325 = vunpack.c.l.b16 %v1170
        %v1326 = vunpack.c.h.b16 %v1170
        %v1327 = vpack.c.b16 %v1233, %v1231
        %v1328 = vpack.c.b16 %v1234, %v1232
        %v1329 = vpack.c.b16 %v1237, %v1235
        %v1330 = vpack.c.b16 %v1238, %v1236
        %v1331 = vpack.c.b16 %v1241, %v1239
        %v1332 = vpack.c.b16 %v1242, %v1240
        %v1333 = vpack.c.b16 %v1245, %v1243
        %v1334 = vpack.c.b16 %v1246, %v1244
        %v1335 = vpack.c.b16 %v1249, %v1247
        %v1336 = vpack.c.b16 %v1250, %v1248
        %v1337 = vpack.c.b16 %v1253, %v1251
        %v1338 = vpack.c.b16 %v1254, %v1252
        %v1339 = vpack.c.b16 %v1257, %v1255
        %v1340 = vpack.c.b16 %v1258, %v1256
        %v1341 = vpack.c.b16 %v1261, %v1259
        %v1342 = vpack.c.b16 %v1262, %v1260
        %v1343 = vpack.c.b16 %v1265, %v1263
        %v1344 = vpack.c.b16 %v1266, %v1264
        %v1345 = vpack.c.b16 %v1269, %v1267
        %v1346 = vpack.c.b16 %v1270, %v1268
        %v1347 = vpack.c.b16 %v1273, %v1271
        %v1348 = vpack.c.b16 %v1274, %v1272
        %v1349 = vpack.c.b16 %v1277, %v1275
        %v1350 = vpack.c.b16 %v1278, %v1276
        %v1351 = vpack.c.b16 %v1281, %v1279
        %v1352 = vpack.c.b16 %v1282, %v1280
        %v1353 = vpack.c.b16 %v1285, %v1283
        %v1354 = vpack.c.b16 %v1286, %v1284
        %v1355 = vpack.c.b16 %v1289, %v1287
        %v1356 = vpack.c.b16 %v1290, %v1288
        %v1357 = vpack.c.b16 %v1293, %v1291
        %v1358 = vpack.c.b16 %v1294, %v1292
        %v1359 = vpack.c.b16 %v1297, %v1295
        %v1360 = vpack.c.b16 %v1298, %v1296
        %v1361 = vpack.c.b16 %v1301, %v1299
        %v1362 = vpack.c.b16 %v1302, %v1300
        %v1363 = vpack.c.b16 %v1305, %v1303
        %v1364 = vpack.c.b16 %v1306, %v1304
        %v1365 = vpack.c.b16 %v1309, %v1307
        %v1366 = vpack.c.b16 %v1310, %v1308
        %v1367 = vpack.c.b16 %v1313, %v1311
        %v1368 = vpack.c.b16 %v1314, %v1312
        %v1369 = vpack.c.b16 %v1317, %v1315
        %v1370 = vpack.c.b16 %v1318, %v1316
        %v1371 = vpack.c.b16 %v1321, %v1319
        %v1372 = vpack.c.b16 %v1322, %v1320
        %v1373 = vpack.c.b16 %v1325, %v1323
        %v1374 = vpack.c.b16 %v1326, %v1324
        %1423 = vmatprep.subr.bf16.mxu0 %v1328
        %1424 = vmatpush1.bf16.msra.mxu0 %v1327
        %1425 = vmatprep.subr.bf16.mxu0 %v1330
        %1426 = vmatpush1.bf16.msra.mxu0 %v1329
        %1427 = vmatprep.subr.bf16.mxu0 %v1332
        %1428 = vmatpush1.bf16.msra.mxu0 %v1331
        %1429 = vmatprep.subr.bf16.mxu0 %v1334
        %1430 = vmatpush1.bf16.msra.mxu0 %v1333
        %1431 = vmatprep.subr.bf16.mxu0 %v1336
        %1432 = vmatpush1.bf16.msra.mxu0 %v1335
        %1433 = vmatprep.subr.bf16.mxu0 %v1338
        %1434 = vmatpush1.bf16.msra.mxu0 %v1337
        %1435 = vmatprep.subr.bf16.mxu0 %v1340
        %1436 = vmatpush1.bf16.msra.mxu0 %v1339
        %1437 = vmatprep.subr.bf16.mxu0 %v1342
        %1438 = vmatpush1.bf16.msra.mxu0 %v1341
        %1439 = vmatprep.subr.bf16.mxu0 %v1344
        %1440 = vmatpush1.bf16.msra.mxu0 %v1343
        %1441 = vmatprep.subr.bf16.mxu0 %v1346
        %1442 = vmatpush1.bf16.msra.mxu0 %v1345
        %1443 = vmatprep.subr.bf16.mxu0 %v1348
        %1444 = vmatpush1.bf16.msra.mxu0 %v1347
        %1445 = vmatprep.subr.bf16.mxu0 %v1350
        %1446 = vmatpush1.bf16.msra.mxu0 %v1349
        %1447 = vmatprep.subr.bf16.mxu0 %v1352
        %1448 = vmatpush1.bf16.msra.mxu0 %v1351
        %1449 = vmatprep.subr.bf16.mxu0 %v1354
        %1450 = vmatpush1.bf16.msra.mxu0 %v1353
        %1451 = vmatprep.subr.bf16.mxu0 %v1356
        %1452 = vmatpush1.bf16.msra.mxu0 %v1355
        %1453 = vmatprep.subr.bf16.mxu0 %v1358
        %1454 = vmatpush1.bf16.msra.mxu0 %v1357
        %1455 = vmatprep.mubr.bf16.mxu0 %v1121
        %1456 = vmatmul.mubr.bf16.gmra.mrb[0].mxu0 %v1120
        %v1457 = vpop.f32.mrb[0].mxu0
        %v1458 = vadd.f32 %v1176, %v1457
        %v1459 = vpop.f32.mrb[0].mxu0
        %v1460 = vadd.f32 %v1180, %v1459
        %v1461 = vpop.f32.mrb[0].mxu0
        %v1462 = vpop.f32.mrb[0].mxu0
        %1463 = vdwg.mxu0
        %1464 = vmatprep.subr.bf16.mxu0 %v1360
        %1465 = vmatpush1.bf16.msra.mxu0 %v1359
        %1466 = vmatprep.subr.bf16.mxu0 %v1362
        %1467 = vmatpush1.bf16.msra.mxu0 %v1361
        %1468 = vmatprep.subr.bf16.mxu0 %v1364
        %1469 = vmatpush1.bf16.msra.mxu0 %v1363
        %1470 = vmatprep.subr.bf16.mxu0 %v1366
        %1471 = vmatpush1.bf16.msra.mxu0 %v1365
        %1472 = vmatprep.subr.bf16.mxu0 %v1368
        %1473 = vmatpush1.bf16.msra.mxu0 %v1367
        %1474 = vmatprep.subr.bf16.mxu0 %v1370
        %1475 = vmatpush1.bf16.msra.mxu0 %v1369
        %1476 = vmatprep.subr.bf16.mxu0 %v1372
        %1477 = vmatpush1.bf16.msra.mxu0 %v1371
        %1478 = vmatprep.subr.bf16.mxu0 %v1374
        %1479 = vmatpush1.bf16.msra.mxu0 %v1373
        %1480 = vmatprep.subr.bf16.mxu0 0
        %1481 = vmatpush1.bf16.msra.mxu0 0
        %1482 = vmatprep.subr.bf16.mxu0 0
        %1483 = vmatpush1.bf16.msra.mxu0 0
        %1484 = vmatprep.subr.bf16.mxu0 0
        %1485 = vmatpush1.bf16.msra.mxu0 0
        %1486 = vmatprep.subr.bf16.mxu0 0
        %1487 = vmatpush1.bf16.msra.mxu0 0
        %1488 = vmatprep.subr.bf16.mxu0 0
        %1489 = vmatpush1.bf16.msra.mxu0 0
        %1490 = vmatprep.subr.bf16.mxu0 0
        %1491 = vmatpush1.bf16.msra.mxu0 0
        %1492 = vmatprep.subr.bf16.mxu0 0
        %1493 = vmatpush1.bf16.msra.mxu0 0
        %1494 = vmatprep.subr.bf16.mxu0 0
        %1495 = vmatpush1.bf16.msra.mxu0 0
        %1496 = vmatprep.mubr.bf16.mxu0 0
        %1497 = vmatmul.mubr.bf16.gmra.mrb[0].mxu0 %v1122
        %v1498 = vpop.f32.mrb[0].mxu0
        %v1499 = vadd.f32 %v1458, %v1498
        %v1500 = vpop.f32.mrb[0].mxu0
        %v1501 = vadd.f32 %v1460, %v1500
        %v1502 = vpop.f32.mrb[0].mxu0
        %v1503 = vpop.f32.mrb[0].mxu0
        %1504 = vdwg.mxu0
        %v1505 = vmul.f32 %v1501, 1.442695
        %v1506 = vpow.pop %v1505
        %v1507 = vld [vmem:[%s450] sm:$0xff]
        %v1508 = vmul.f32 %v1506, %v1507
        %v1509 = vadd.f32 %v1499, %v1508
        %v1510 = vpack.c.bf16 %v1509, %v1509
        %v1511 = vld [vmem:[#allocation8] sm:$0xff]
        %v1512 = vld [vmem:[#allocation8 + $0x8] sm:$0xf]
        %v1513 = vld [vmem:[#allocation8 + $0xc] sm:$0xff]
        %v1514 = vld [vmem:[#allocation8 + $0x14] sm:$0xf]
        %v1515 = vld [vmem:[#allocation8 + $0x18] sm:$0xff]
        %v1516 = vld [vmem:[#allocation8 + $0x20] sm:$0xf]
        %v1517 = vld [vmem:[#allocation8 + $0x24] sm:$0xff]
        %v1518 = vld [vmem:[#allocation8 + $0x2c] sm:$0xf]
        %v1519 = vld [vmem:[#allocation8 + $0x30] sm:$0xff]
        %v1520 = vld [vmem:[#allocation8 + $0x38] sm:$0xf]
        %v1521 = vld [vmem:[#allocation8 + $0x3c] sm:$0xff]
        %v1522 = vld [vmem:[#allocation8 + $0x44] sm:$0xf]
        %v1523 = vld [vmem:[#allocation8 + $0x48] sm:$0xff]
        %v1524 = vld [vmem:[#allocation8 + $0x50] sm:$0xf]
        %v1525 = vld [vmem:[#allocation8 + $0x54] sm:$0xff]
        %v1526 = vld [vmem:[#allocation8 + $0x5c] sm:$0xf]
        %v1527 = vld [vmem:[#allocation8 + $0x60] sm:$0xff]
        %v1528 = vld [vmem:[#allocation8 + $0x68] sm:$0xf]
        %v1529 = vld [vmem:[#allocation8 + $0x6c] sm:$0xff]
        %v1530 = vld [vmem:[#allocation8 + $0x74] sm:$0xf]
        %v1531 = vld [vmem:[#allocation8 + $0x78] sm:$0xff]
        %v1532 = vld [vmem:[#allocation8 + $0x80] sm:$0xf]
        %v1533 = vld [vmem:[#allocation8 + $0x84] sm:$0xff]
        %v1534 = vld [vmem:[#allocation8 + $0x8c] sm:$0xf]
        %v1535 = vld [vmem:[#allocation8 + $0x90] sm:$0xff]
        %v1536 = vld [vmem:[#allocation8 + $0x98] sm:$0xf]
        %v1537 = vld [vmem:[#allocation8 + $0x9c] sm:$0xff]
        %v1538 = vld [vmem:[#allocation8 + $0xa4] sm:$0xf]
        %v1539 = vld [vmem:[#allocation8 + $0xa8] sm:$0xff]
        %v1540 = vld [vmem:[#allocation8 + $0xb0] sm:$0xf]
        %v1541 = vld [vmem:[#allocation8 + $0xb4] sm:$0xff]
        %v1542 = vld [vmem:[#allocation8 + $0xbc] sm:$0xf]
        %v1543 = vld [vmem:[%s6] sm:$0x7]
        %v1545 = vlaneseq
        %v1546 = vshrl.u32 %v1545, 7
        %v1547 = vsub.s32 0, %v1546
        %v1548 = vrot.slane %v1543, %v1547
        %v1549 = vlaneseq
        %v1550 = vshrl.u32 %v1549, 7
        %v1551 = vsub.s32 1, %v1550
        %v1552 = vrot.slane %v1543, %v1551
        %v1553 = vlaneseq
        %v1554 = vshrl.u32 %v1553, 7
        %v1555 = vsub.s32 2, %v1554
        %v1556 = vrot.slane %v1543, %v1555
        %v1592 = vunpack.c.l.b16 %v1511
        %v1593 = vunpack.c.h.b16 %v1511
        %v1594 = vunpack.c.l.b16 %v1512
        %v1595 = vunpack.c.l.b16 %v1513
        %v1596 = vunpack.c.h.b16 %v1513
        %v1597 = vunpack.c.l.b16 %v1514
        %v1598 = vunpack.c.l.b16 %v1515
        %v1599 = vunpack.c.h.b16 %v1515
        %v1600 = vunpack.c.l.b16 %v1516
        %v1601 = vunpack.c.l.b16 %v1517
        %v1602 = vunpack.c.h.b16 %v1517
        %v1603 = vunpack.c.l.b16 %v1518
        %v1604 = vunpack.c.l.b16 %v1519
        %v1605 = vunpack.c.h.b16 %v1519
        %v1606 = vunpack.c.l.b16 %v1520
        %v1607 = vunpack.c.l.b16 %v1521
        %v1608 = vunpack.c.h.b16 %v1521
        %v1609 = vunpack.c.l.b16 %v1522
        %v1610 = vunpack.c.l.b16 %v1523
        %v1611 = vunpack.c.h.b16 %v1523
        %v1612 = vunpack.c.l.b16 %v1524
        %v1613 = vunpack.c.l.b16 %v1525
        %v1614 = vunpack.c.h.b16 %v1525
        %v1615 = vunpack.c.l.b16 %v1526
        %v1616 = vunpack.c.l.b16 %v1527
        %v1617 = vunpack.c.h.b16 %v1527
        %v1618 = vunpack.c.l.b16 %v1528
        %v1619 = vunpack.c.l.b16 %v1529
        %v1620 = vunpack.c.h.b16 %v1529
        %v1621 = vunpack.c.l.b16 %v1530
        %v1622 = vunpack.c.l.b16 %v1531
        %v1623 = vunpack.c.h.b16 %v1531
        %v1624 = vunpack.c.l.b16 %v1532
        %v1625 = vunpack.c.l.b16 %v1533
        %v1626 = vunpack.c.h.b16 %v1533
        %v1627 = vunpack.c.l.b16 %v1534
        %v1628 = vunpack.c.l.b16 %v1535
        %v1629 = vunpack.c.h.b16 %v1535
        %v1630 = vunpack.c.l.b16 %v1536
        %v1631 = vunpack.c.l.b16 %v1537
        %v1632 = vunpack.c.h.b16 %v1537
        %v1633 = vunpack.c.l.b16 %v1538
        %v1634 = vunpack.c.l.b16 %v1539
        %v1635 = vunpack.c.h.b16 %v1539
        %v1636 = vunpack.c.l.b16 %v1540
        %v1637 = vunpack.c.l.b16 %v1541
        %v1638 = vunpack.c.h.b16 %v1541
        %v1639 = vunpack.c.l.b16 %v1542
        %v1640 = vpack.c.b16 %v1595, %v1592
        %v1641 = vpack.c.b16 %v1596, %v1593
        %v1642 = vpack.c.b16 %v1597, %v1594
        %v1643 = vpack.c.b16 %v1601, %v1598
        %v1644 = vpack.c.b16 %v1602, %v1599
        %v1645 = vpack.c.b16 %v1603, %v1600
        %v1646 = vpack.c.b16 %v1607, %v1604
        %v1647 = vpack.c.b16 %v1608, %v1605
        %v1648 = vpack.c.b16 %v1609, %v1606
        %v1649 = vpack.c.b16 %v1613, %v1610
        %v1650 = vpack.c.b16 %v1614, %v1611
        %v1651 = vpack.c.b16 %v1615, %v1612
        %v1652 = vpack.c.b16 %v1619, %v1616
        %v1653 = vpack.c.b16 %v1620, %v1617
        %v1654 = vpack.c.b16 %v1621, %v1618
        %v1655 = vpack.c.b16 %v1625, %v1622
        %v1656 = vpack.c.b16 %v1626, %v1623
        %v1657 = vpack.c.b16 %v1627, %v1624
        %v1658 = vpack.c.b16 %v1631, %v1628
        %v1659 = vpack.c.b16 %v1632, %v1629
        %v1660 = vpack.c.b16 %v1633, %v1630
        %v1661 = vpack.c.b16 %v1637, %v1634
        %v1662 = vpack.c.b16 %v1638, %v1635
        %v1663 = vpack.c.b16 %v1639, %v1636
        %1688 = vmatprep.subr.bf16.mxu0 %v1641
        %1689 = vmatpush1.bf16.msra.mxu0 %v1640
        %1690 = vmatprep.subr.bf16.mxu0 %v1644
        %1691 = vmatpush1.bf16.msra.mxu0 %v1643
        %1692 = vmatprep.subr.bf16.mxu0 %v1647
        %1693 = vmatpush1.bf16.msra.mxu0 %v1646
        %1694 = vmatprep.subr.bf16.mxu0 %v1650
        %1695 = vmatpush1.bf16.msra.mxu0 %v1649
        %1696 = vmatprep.subr.bf16.mxu0 %v1653
        %1697 = vmatpush1.bf16.msra.mxu0 %v1652
        %1698 = vmatprep.subr.bf16.mxu0 %v1656
        %1699 = vmatpush1.bf16.msra.mxu0 %v1655
        %1700 = vmatprep.subr.bf16.mxu0 %v1659
        %1701 = vmatpush1.bf16.msra.mxu0 %v1658
        %1702 = vmatprep.subr.bf16.mxu0 %v1662
        %1703 = vmatpush1.bf16.msra.mxu0 %v1661
        %1704 = vmatprep.subr.bf16.mxu0 0
        %1705 = vmatpush1.bf16.msra.mxu0 0
        %1706 = vmatprep.subr.bf16.mxu0 0
        %1707 = vmatpush1.bf16.msra.mxu0 0
        %1708 = vmatprep.subr.bf16.mxu0 0
        %1709 = vmatpush1.bf16.msra.mxu0 0
        %1710 = vmatprep.subr.bf16.mxu0 0
        %1711 = vmatpush1.bf16.msra.mxu0 0
        %1712 = vmatprep.subr.bf16.mxu0 0
        %1713 = vmatpush1.bf16.msra.mxu0 0
        %1714 = vmatprep.subr.bf16.mxu0 0
        %1715 = vmatpush1.bf16.msra.mxu0 0
        %1716 = vmatprep.subr.bf16.mxu0 0
        %1717 = vmatpush1.bf16.msra.mxu0 0
        %1718 = vmatprep.subr.bf16.mxu0 0
        %1719 = vmatpush1.bf16.msra.mxu0 0
        %1720 = vmatprep.mubr.bf16.mxu0 0
        %1721 = vmatmul.mubr.bf16.gmra.mrb[0].mxu0 %v1510
        %v1722 = vpop.f32.mrb[0].mxu0
        %v1723 = vadd.f32 %v1548, %v1722
        %v1724 = vpop.f32.mrb[0].mxu0
        %v1725 = vadd.f32 %v1552, %v1724
        %v1726 = vpop.f32.mrb[0].mxu0
        %v1727 = vpop.f32.mrb[0].mxu0
        %1728 = vdwg.mxu0
        %1729 = vmatprep.subr.bf16.mxu0 0
        %1730 = vmatpush1.bf16.msra.mxu0 %v1642
        %1731 = vmatprep.subr.bf16.mxu0 0
        %1732 = vmatpush1.bf16.msra.mxu0 %v1645
        %1733 = vmatprep.subr.bf16.mxu0 0
        %1734 = vmatpush1.bf16.msra.mxu0 %v1648
        %1735 = vmatprep.subr.bf16.mxu0 0
        %1736 = vmatpush1.bf16.msra.mxu0 %v1651
        %1737 = vmatprep.subr.bf16.mxu0 0
        %1738 = vmatpush1.bf16.msra.mxu0 %v1654
        %1739 = vmatprep.subr.bf16.mxu0 0
        %1740 = vmatpush1.bf16.msra.mxu0 %v1657
        %1741 = vmatprep.subr.bf16.mxu0 0
        %1742 = vmatpush1.bf16.msra.mxu0 %v1660
        %1743 = vmatprep.subr.bf16.mxu0 0
        %1744 = vmatpush1.bf16.msra.mxu0 %v1663
        %1745 = vmatprep.subr.bf16.mxu0 0
        %1746 = vmatpush1.bf16.msra.mxu0 0
        %1747 = vmatprep.subr.bf16.mxu0 0
        %1748 = vmatpush1.bf16.msra.mxu0 0
        %1749 = vmatprep.subr.bf16.mxu0 0
        %1750 = vmatpush1.bf16.msra.mxu0 0
        %1751 = vmatprep.subr.bf16.mxu0 0
        %1752 = vmatpush1.bf16.msra.mxu0 0
        %1753 = vmatprep.subr.bf16.mxu0 0
        %1754 = vmatpush1.bf16.msra.mxu0 0
        %1755 = vmatprep.subr.bf16.mxu0 0
        %1756 = vmatpush1.bf16.msra.mxu0 0
        %1757 = vmatprep.subr.bf16.mxu0 0
        %1758 = vmatpush1.bf16.msra.mxu0 0
        %1759 = vmatprep.subr.bf16.mxu0 0
        %1760 = vmatpush1.bf16.msra.mxu0 0
        %1761 = vmatprep.mubr.bf16.mxu0 0
        %1762 = vmatmul.mubr.bf16.gmra.mrb[0].mxu0 %v1510
        %v1763 = vpop.f32.mrb[0].mxu0
        %v1764 = vadd.f32 %v1556, %v1763
        %v1765 = vpop.f32.mrb[0].mxu0
        %v1766 = vpop.f32.mrb[0].mxu0
        %v1767 = vpop.f32.mrb[0].mxu0
        %1768 = vdwg.mxu0
        %v1769 = vmax.f32 %v1723, 0.0
        %v1770 = vmax.f32 %v1725, 0.0
        %v1771 = vmax.f32 %v1764, 0.0
        %v1772 = vpack.c.bf16 %v1769, %v1769
        %v1773 = vpack.c.bf16 %v1770, %v1770
        %v1774 = vpack.c.bf16 %v1771, %v1771
        %v1775 = vld [vmem:[#allocation10] sm:$0xff]
        %v1776 = vld [vmem:[#allocation10 + $0x8] sm:$0xf]
        %v1777 = vld [vmem:[#allocation10 + $0xc] sm:$0xff]
        %v1778 = vld [vmem:[#allocation10 + $0x14] sm:$0xf]
        %v1779 = vld [vmem:[#allocation10 + $0x18] sm:$0xff]
        %v1780 = vld [vmem:[#allocation10 + $0x20] sm:$0xf]
        %v1781 = vld [vmem:[#allocation10 + $0x24] sm:$0xff]
        %v1782 = vld [vmem:[#allocation10 + $0x2c] sm:$0xf]
        %v1783 = vld [vmem:[#allocation10 + $0x30] sm:$0xff]
        %v1784 = vld [vmem:[#allocation10 + $0x38] sm:$0xf]
        %v1785 = vld [vmem:[#allocation10 + $0x3c] sm:$0xff]
        %v1786 = vld [vmem:[#allocation10 + $0x44] sm:$0xf]
        %v1787 = vld [vmem:[#allocation10 + $0x48] sm:$0xff]
        %v1788 = vld [vmem:[#allocation10 + $0x50] sm:$0xf]
        %v1789 = vld [vmem:[#allocation10 + $0x54] sm:$0xff]
        %v1790 = vld [vmem:[#allocation10 + $0x5c] sm:$0xf]
        %v1791 = vld [vmem:[#allocation10 + $0x60] sm:$0xff]
        %v1792 = vld [vmem:[#allocation10 + $0x68] sm:$0xf]
        %v1793 = vld [vmem:[#allocation10 + $0x6c] sm:$0xff]
        %v1794 = vld [vmem:[#allocation10 + $0x74] sm:$0xf]
        %v1795 = vld [vmem:[#allocation10 + $0x78] sm:$0xff]
        %v1796 = vld [vmem:[#allocation10 + $0x80] sm:$0xf]
        %v1797 = vld [vmem:[#allocation10 + $0x84] sm:$0xff]
        %v1798 = vld [vmem:[#allocation10 + $0x8c] sm:$0xf]
        %v1799 = vld [vmem:[#allocation10 + $0x90] sm:$0xff]
        %v1800 = vld [vmem:[#allocation10 + $0x98] sm:$0xf]
        %v1801 = vld [vmem:[#allocation10 + $0x9c] sm:$0xff]
        %v1802 = vld [vmem:[#allocation10 + $0xa4] sm:$0xf]
        %v1803 = vld [vmem:[#allocation10 + $0xa8] sm:$0xff]
        %v1804 = vld [vmem:[#allocation10 + $0xb0] sm:$0xf]
        %v1805 = vld [vmem:[#allocation10 + $0xb4] sm:$0xff]
        %v1806 = vld [vmem:[#allocation10 + $0xbc] sm:$0xf]
        %v1807 = vld [vmem:[#allocation10 + $0xc0] sm:$0xff]
        %v1808 = vld [vmem:[#allocation10 + $0xc8] sm:$0xf]
        %v1809 = vld [vmem:[#allocation10 + $0xcc] sm:$0xff]
        %v1810 = vld [vmem:[#allocation10 + $0xd4] sm:$0xf]
        %v1811 = vld [vmem:[#allocation10 + $0xd8] sm:$0xff]
        %v1812 = vld [vmem:[#allocation10 + $0xe0] sm:$0xf]
        %v1813 = vld [vmem:[#allocation10 + $0xe4] sm:$0xff]
        %v1814 = vld [vmem:[#allocation10 + $0xec] sm:$0xf]
        %v1815 = vld [vmem:[#allocation10 + $0xf0] sm:$0xff]
        %v1816 = vld [vmem:[#allocation10 + $0xf8] sm:$0xf]
        %v1817 = vld [vmem:[#allocation10 + $0xfc] sm:$0xff]
        %v1818 = vld [vmem:[#allocation10 + $0x104] sm:$0xf]
        %v1819 = vld [vmem:[#allocation10 + $0x108] sm:$0xff]
        %v1820 = vld [vmem:[#allocation10 + $0x110] sm:$0xf]
        %v1821 = vld [vmem:[#allocation10 + $0x114] sm:$0xff]
        %v1822 = vld [vmem:[#allocation10 + $0x11c] sm:$0xf]
        %v1823 = vld [vmem:[#allocation10 + $0x120] sm:$0xff]
        %v1824 = vld [vmem:[#allocation10 + $0x128] sm:$0xf]
        %v1825 = vld [vmem:[#allocation10 + $0x12c] sm:$0xff]
        %v1826 = vld [vmem:[#allocation10 + $0x134] sm:$0xf]
        %v1827 = vld [vmem:[#allocation10 + $0x138] sm:$0xff]
        %v1828 = vld [vmem:[#allocation10 + $0x140] sm:$0xf]
        %v1829 = vld [vmem:[#allocation10 + $0x144] sm:$0xff]
        %v1830 = vld [vmem:[#allocation10 + $0x14c] sm:$0xf]
        %v1831 = vld [vmem:[#allocation10 + $0x150] sm:$0xff]
        %v1832 = vld [vmem:[#allocation10 + $0x158] sm:$0xf]
        %v1833 = vld [vmem:[#allocation10 + $0x15c] sm:$0xff]
        %v1834 = vld [vmem:[#allocation10 + $0x164] sm:$0xf]
        %v1835 = vld [vmem:[#allocation10 + $0x168] sm:$0xff]
        %v1836 = vld [vmem:[#allocation10 + $0x170] sm:$0xf]
        %v1837 = vld [vmem:[#allocation10 + $0x174] sm:$0xff]
        %v1838 = vld [vmem:[#allocation10 + $0x17c] sm:$0xf]
        %v1839 = vld [vmem:[#allocation10 + $0x180] sm:$0xff]
        %v1840 = vld [vmem:[#allocation10 + $0x188] sm:$0xf]
        %v1841 = vld [vmem:[#allocation10 + $0x18c] sm:$0xff]
        %v1842 = vld [vmem:[#allocation10 + $0x194] sm:$0xf]
        %v1843 = vld [vmem:[#allocation10 + $0x198] sm:$0xff]
        %v1844 = vld [vmem:[#allocation10 + $0x1a0] sm:$0xf]
        %v1845 = vld [vmem:[#allocation10 + $0x1a4] sm:$0xff]
        %v1846 = vld [vmem:[#allocation10 + $0x1ac] sm:$0xf]
        %v1847 = vld [vmem:[#allocation10 + $0x1b0] sm:$0xff]
        %v1848 = vld [vmem:[#allocation10 + $0x1b8] sm:$0xf]
        %v1849 = vld [vmem:[#allocation10 + $0x1bc] sm:$0xff]
        %v1850 = vld [vmem:[#allocation10 + $0x1c4] sm:$0xf]
        %v1851 = vld [vmem:[#allocation10 + $0x1c8] sm:$0xff]
        %v1852 = vld [vmem:[#allocation10 + $0x1d0] sm:$0xf]
        %v1853 = vld [vmem:[#allocation10 + $0x1d4] sm:$0xff]
        %v1854 = vld [vmem:[#allocation10 + $0x1dc] sm:$0xf]
        %v1855 = vld [vmem:[#allocation10 + $0x1e0] sm:$0xff]
        %v1856 = vld [vmem:[#allocation10 + $0x1e8] sm:$0xf]
        %v1857 = vld [vmem:[#allocation10 + $0x1ec] sm:$0xff]
        %v1858 = vld [vmem:[#allocation10 + $0x1f4] sm:$0xf]
        %v1859 = vld [vmem:[#allocation10 + $0x1f8] sm:$0xff]
        %v1860 = vld [vmem:[#allocation10 + $0x200] sm:$0xf]
        %v1861 = vld [vmem:[#allocation10 + $0x204] sm:$0xff]
        %v1862 = vld [vmem:[#allocation10 + $0x20c] sm:$0xf]
        %v1863 = vld [vmem:[#allocation10 + $0x210] sm:$0xff]
        %v1864 = vld [vmem:[#allocation10 + $0x218] sm:$0xf]
        %v1865 = vld [vmem:[#allocation10 + $0x21c] sm:$0xff]
        %v1866 = vld [vmem:[#allocation10 + $0x224] sm:$0xf]
        %v1867 = vld [vmem:[#allocation10 + $0x228] sm:$0xff]
        %v1868 = vld [vmem:[#allocation10 + $0x230] sm:$0xf]
        %v1869 = vld [vmem:[#allocation10 + $0x234] sm:$0xff]
        %v1870 = vld [vmem:[#allocation10 + $0x23c] sm:$0xf]
        %v1871 = vld [vmem:[%s8] sm:$0x7]
        %v1873 = vlaneseq
        %v1874 = vshrl.u32 %v1873, 7
        %v1875 = vsub.s32 0, %v1874
        %v1876 = vrot.slane %v1871, %v1875
        %v1877 = vlaneseq
        %v1878 = vshrl.u32 %v1877, 7
        %v1879 = vsub.s32 1, %v1878
        %v1880 = vrot.slane %v1871, %v1879
        %v1881 = vlaneseq
        %v1882 = vshrl.u32 %v1881, 7
        %v1883 = vsub.s32 2, %v1882
        %v1884 = vrot.slane %v1871, %v1883
        %v1984 = vunpack.c.l.b16 %v1775
        %v1985 = vunpack.c.h.b16 %v1775
        %v1986 = vunpack.c.l.b16 %v1776
        %v1987 = vunpack.c.l.b16 %v1777
        %v1988 = vunpack.c.h.b16 %v1777
        %v1989 = vunpack.c.l.b16 %v1778
        %v1990 = vunpack.c.l.b16 %v1779
        %v1991 = vunpack.c.h.b16 %v1779
        %v1992 = vunpack.c.l.b16 %v1780
        %v1993 = vunpack.c.l.b16 %v1781
        %v1994 = vunpack.c.h.b16 %v1781
        %v1995 = vunpack.c.l.b16 %v1782
        %v1996 = vunpack.c.l.b16 %v1783
        %v1997 = vunpack.c.h.b16 %v1783
        %v1998 = vunpack.c.l.b16 %v1784
        %v1999 = vunpack.c.l.b16 %v1785
        %v2000 = vunpack.c.h.b16 %v1785
        %v2001 = vunpack.c.l.b16 %v1786
        %v2002 = vunpack.c.l.b16 %v1787
        %v2003 = vunpack.c.h.b16 %v1787
        %v2004 = vunpack.c.l.b16 %v1788
        %v2005 = vunpack.c.l.b16 %v1789
        %v2006 = vunpack.c.h.b16 %v1789
        %v2007 = vunpack.c.l.b16 %v1790
        %v2008 = vunpack.c.l.b16 %v1791
        %v2009 = vunpack.c.h.b16 %v1791
        %v2010 = vunpack.c.l.b16 %v1792
        %v2011 = vunpack.c.l.b16 %v1793
        %v2012 = vunpack.c.h.b16 %v1793
        %v2013 = vunpack.c.l.b16 %v1794
        %v2014 = vunpack.c.l.b16 %v1795
        %v2015 = vunpack.c.h.b16 %v1795
        %v2016 = vunpack.c.l.b16 %v1796
        %v2017 = vunpack.c.l.b16 %v1797
        %v2018 = vunpack.c.h.b16 %v1797
        %v2019 = vunpack.c.l.b16 %v1798
        %v2020 = vunpack.c.l.b16 %v1799
        %v2021 = vunpack.c.h.b16 %v1799
        %v2022 = vunpack.c.l.b16 %v1800
        %v2023 = vunpack.c.l.b16 %v1801
        %v2024 = vunpack.c.h.b16 %v1801
        %v2025 = vunpack.c.l.b16 %v1802
        %v2026 = vunpack.c.l.b16 %v1803
        %v2027 = vunpack.c.h.b16 %v1803
        %v2028 = vunpack.c.l.b16 %v1804
        %v2029 = vunpack.c.l.b16 %v1805
        %v2030 = vunpack.c.h.b16 %v1805
        %v2031 = vunpack.c.l.b16 %v1806
        %v2032 = vunpack.c.l.b16 %v1807
        %v2033 = vunpack.c.h.b16 %v1807
        %v2034 = vunpack.c.l.b16 %v1808
        %v2035 = vunpack.c.l.b16 %v1809
        %v2036 = vunpack.c.h.b16 %v1809
        %v2037 = vunpack.c.l.b16 %v1810
        %v2038 = vunpack.c.l.b16 %v1811
        %v2039 = vunpack.c.h.b16 %v1811
        %v2040 = vunpack.c.l.b16 %v1812
        %v2041 = vunpack.c.l.b16 %v1813
        %v2042 = vunpack.c.h.b16 %v1813
        %v2043 = vunpack.c.l.b16 %v1814
        %v2044 = vunpack.c.l.b16 %v1815
        %v2045 = vunpack.c.h.b16 %v1815
        %v2046 = vunpack.c.l.b16 %v1816
        %v2047 = vunpack.c.l.b16 %v1817
        %v2048 = vunpack.c.h.b16 %v1817
        %v2049 = vunpack.c.l.b16 %v1818
        %v2050 = vunpack.c.l.b16 %v1819
        %v2051 = vunpack.c.h.b16 %v1819
        %v2052 = vunpack.c.l.b16 %v1820
        %v2053 = vunpack.c.l.b16 %v1821
        %v2054 = vunpack.c.h.b16 %v1821
        %v2055 = vunpack.c.l.b16 %v1822
        %v2056 = vunpack.c.l.b16 %v1823
        %v2057 = vunpack.c.h.b16 %v1823
        %v2058 = vunpack.c.l.b16 %v1824
        %v2059 = vunpack.c.l.b16 %v1825
        %v2060 = vunpack.c.h.b16 %v1825
        %v2061 = vunpack.c.l.b16 %v1826
        %v2062 = vunpack.c.l.b16 %v1827
        %v2063 = vunpack.c.h.b16 %v1827
        %v2064 = vunpack.c.l.b16 %v1828
        %v2065 = vunpack.c.l.b16 %v1829
        %v2066 = vunpack.c.h.b16 %v1829
        %v2067 = vunpack.c.l.b16 %v1830
        %v2068 = vunpack.c.l.b16 %v1831
        %v2069 = vunpack.c.h.b16 %v1831
        %v2070 = vunpack.c.l.b16 %v1832
        %v2071 = vunpack.c.l.b16 %v1833
        %v2072 = vunpack.c.h.b16 %v1833
        %v2073 = vunpack.c.l.b16 %v1834
        %v2074 = vunpack.c.l.b16 %v1835
        %v2075 = vunpack.c.h.b16 %v1835
        %v2076 = vunpack.c.l.b16 %v1836
        %v2077 = vunpack.c.l.b16 %v1837
        %v2078 = vunpack.c.h.b16 %v1837
        %v2079 = vunpack.c.l.b16 %v1838
        %v2080 = vunpack.c.l.b16 %v1839
        %v2081 = vunpack.c.h.b16 %v1839
        %v2082 = vunpack.c.l.b16 %v1840
        %v2083 = vunpack.c.l.b16 %v1841
        %v2084 = vunpack.c.h.b16 %v1841
        %v2085 = vunpack.c.l.b16 %v1842
        %v2086 = vunpack.c.l.b16 %v1843
        %v2087 = vunpack.c.h.b16 %v1843
        %v2088 = vunpack.c.l.b16 %v1844
        %v2089 = vunpack.c.l.b16 %v1845
        %v2090 = vunpack.c.h.b16 %v1845
        %v2091 = vunpack.c.l.b16 %v1846
        %v2092 = vunpack.c.l.b16 %v1847
        %v2093 = vunpack.c.h.b16 %v1847
        %v2094 = vunpack.c.l.b16 %v1848
        %v2095 = vunpack.c.l.b16 %v1849
        %v2096 = vunpack.c.h.b16 %v1849
        %v2097 = vunpack.c.l.b16 %v1850
        %v2098 = vunpack.c.l.b16 %v1851
        %v2099 = vunpack.c.h.b16 %v1851
        %v2100 = vunpack.c.l.b16 %v1852
        %v2101 = vunpack.c.l.b16 %v1853
        %v2102 = vunpack.c.h.b16 %v1853
        %v2103 = vunpack.c.l.b16 %v1854
        %v2104 = vunpack.c.l.b16 %v1855
        %v2105 = vunpack.c.h.b16 %v1855
        %v2106 = vunpack.c.l.b16 %v1856
        %v2107 = vunpack.c.l.b16 %v1857
        %v2108 = vunpack.c.h.b16 %v1857
        %v2109 = vunpack.c.l.b16 %v1858
        %v2110 = vunpack.c.l.b16 %v1859
        %v2111 = vunpack.c.h.b16 %v1859
        %v2112 = vunpack.c.l.b16 %v1860
        %v2113 = vunpack.c.l.b16 %v1861
        %v2114 = vunpack.c.h.b16 %v1861
        %v2115 = vunpack.c.l.b16 %v1862
        %v2116 = vunpack.c.l.b16 %v1863
        %v2117 = vunpack.c.h.b16 %v1863
        %v2118 = vunpack.c.l.b16 %v1864
        %v2119 = vunpack.c.l.b16 %v1865
        %v2120 = vunpack.c.h.b16 %v1865
        %v2121 = vunpack.c.l.b16 %v1866
        %v2122 = vunpack.c.l.b16 %v1867
        %v2123 = vunpack.c.h.b16 %v1867
        %v2124 = vunpack.c.l.b16 %v1868
        %v2125 = vunpack.c.l.b16 %v1869
        %v2126 = vunpack.c.h.b16 %v1869
        %v2127 = vunpack.c.l.b16 %v1870
        %v2128 = vpack.c.b16 %v1987, %v1984
        %v2129 = vpack.c.b16 %v1988, %v1985
        %v2130 = vpack.c.b16 %v1989, %v1986
        %v2131 = vpack.c.b16 %v1993, %v1990
        %v2132 = vpack.c.b16 %v1994, %v1991
        %v2133 = vpack.c.b16 %v1995, %v1992
        %v2134 = vpack.c.b16 %v1999, %v1996
        %v2135 = vpack.c.b16 %v2000, %v1997
        %v2136 = vpack.c.b16 %v2001, %v1998
        %v2137 = vpack.c.b16 %v2005, %v2002
        %v2138 = vpack.c.b16 %v2006, %v2003
        %v2139 = vpack.c.b16 %v2007, %v2004
        %v2140 = vpack.c.b16 %v2011, %v2008
        %v2141 = vpack.c.b16 %v2012, %v2009
        %v2142 = vpack.c.b16 %v2013, %v2010
        %v2143 = vpack.c.b16 %v2017, %v2014
        %v2144 = vpack.c.b16 %v2018, %v2015
        %v2145 = vpack.c.b16 %v2019, %v2016
        %v2146 = vpack.c.b16 %v2023, %v2020
        %v2147 = vpack.c.b16 %v2024, %v2021
        %v2148 = vpack.c.b16 %v2025, %v2022
        %v2149 = vpack.c.b16 %v2029, %v2026
        %v2150 = vpack.c.b16 %v2030, %v2027
        %v2151 = vpack.c.b16 %v2031, %v2028
        %v2152 = vpack.c.b16 %v2035, %v2032
        %v2153 = vpack.c.b16 %v2036, %v2033
        %v2154 = vpack.c.b16 %v2037, %v2034
        %v2155 = vpack.c.b16 %v2041, %v2038
        %v2156 = vpack.c.b16 %v2042, %v2039
        %v2157 = vpack.c.b16 %v2043, %v2040
        %v2158 = vpack.c.b16 %v2047, %v2044
        %v2159 = vpack.c.b16 %v2048, %v2045
        %v2160 = vpack.c.b16 %v2049, %v2046
        %v2161 = vpack.c.b16 %v2053, %v2050
        %v2162 = vpack.c.b16 %v2054, %v2051
        %v2163 = vpack.c.b16 %v2055, %v2052
        %v2164 = vpack.c.b16 %v2059, %v2056
        %v2165 = vpack.c.b16 %v2060, %v2057
        %v2166 = vpack.c.b16 %v2061, %v2058
        %v2167 = vpack.c.b16 %v2065, %v2062
        %v2168 = vpack.c.b16 %v2066, %v2063
        %v2169 = vpack.c.b16 %v2067, %v2064
        %v2170 = vpack.c.b16 %v2071, %v2068
        %v2171 = vpack.c.b16 %v2072, %v2069
        %v2172 = vpack.c.b16 %v2073, %v2070
        %v2173 = vpack.c.b16 %v2077, %v2074
        %v2174 = vpack.c.b16 %v2078, %v2075
        %v2175 = vpack.c.b16 %v2079, %v2076
        %v2176 = vpack.c.b16 %v2083, %v2080
        %v2177 = vpack.c.b16 %v2084, %v2081
        %v2178 = vpack.c.b16 %v2085, %v2082
        %v2179 = vpack.c.b16 %v2089, %v2086
        %v2180 = vpack.c.b16 %v2090, %v2087
        %v2181 = vpack.c.b16 %v2091, %v2088
        %v2182 = vpack.c.b16 %v2095, %v2092
        %v2183 = vpack.c.b16 %v2096, %v2093
        %v2184 = vpack.c.b16 %v2097, %v2094
        %v2185 = vpack.c.b16 %v2101, %v2098
        %v2186 = vpack.c.b16 %v2102, %v2099
        %v2187 = vpack.c.b16 %v2103, %v2100
        %v2188 = vpack.c.b16 %v2107, %v2104
        %v2189 = vpack.c.b16 %v2108, %v2105
        %v2190 = vpack.c.b16 %v2109, %v2106
        %v2191 = vpack.c.b16 %v2113, %v2110
        %v2192 = vpack.c.b16 %v2114, %v2111
        %v2193 = vpack.c.b16 %v2115, %v2112
        %v2194 = vpack.c.b16 %v2119, %v2116
        %v2195 = vpack.c.b16 %v2120, %v2117
        %v2196 = vpack.c.b16 %v2121, %v2118
        %v2197 = vpack.c.b16 %v2125, %v2122
        %v2198 = vpack.c.b16 %v2126, %v2123
        %v2199 = vpack.c.b16 %v2127, %v2124
        %2272 = vmatprep.subr.bf16.mxu0 %v2129
        %2273 = vmatpush1.bf16.msra.mxu0 %v2128
        %2274 = vmatprep.subr.bf16.mxu0 %v2132
        %2275 = vmatpush1.bf16.msra.mxu0 %v2131
        %2276 = vmatprep.subr.bf16.mxu0 %v2135
        %2277 = vmatpush1.bf16.msra.mxu0 %v2134
        %2278 = vmatprep.subr.bf16.mxu0 %v2138
        %2279 = vmatpush1.bf16.msra.mxu0 %v2137
        %2280 = vmatprep.subr.bf16.mxu0 %v2141
        %2281 = vmatpush1.bf16.msra.mxu0 %v2140
        %2282 = vmatprep.subr.bf16.mxu0 %v2144
        %2283 = vmatpush1.bf16.msra.mxu0 %v2143
        %2284 = vmatprep.subr.bf16.mxu0 %v2147
        %2285 = vmatpush1.bf16.msra.mxu0 %v2146
        %2286 = vmatprep.subr.bf16.mxu0 %v2150
        %2287 = vmatpush1.bf16.msra.mxu0 %v2149
        %2288 = vmatprep.subr.bf16.mxu0 %v2153
        %2289 = vmatpush1.bf16.msra.mxu0 %v2152
        %2290 = vmatprep.subr.bf16.mxu0 %v2156
        %2291 = vmatpush1.bf16.msra.mxu0 %v2155
        %2292 = vmatprep.subr.bf16.mxu0 %v2159
        %2293 = vmatpush1.bf16.msra.mxu0 %v2158
        %2294 = vmatprep.subr.bf16.mxu0 %v2162
        %2295 = vmatpush1.bf16.msra.mxu0 %v2161
        %2296 = vmatprep.subr.bf16.mxu0 %v2165
        %2297 = vmatpush1.bf16.msra.mxu0 %v2164
        %2298 = vmatprep.subr.bf16.mxu0 %v2168
        %2299 = vmatpush1.bf16.msra.mxu0 %v2167
        %2300 = vmatprep.subr.bf16.mxu0 %v2171
        %2301 = vmatpush1.bf16.msra.mxu0 %v2170
        %2302 = vmatprep.subr.bf16.mxu0 %v2174
        %2303 = vmatpush1.bf16.msra.mxu0 %v2173
        %2304 = vmatprep.mubr.bf16.mxu0 %v1773
        %2305 = vmatmul.mubr.bf16.gmra.mrb[0].mxu0 %v1772
        %v2306 = vpop.f32.mrb[0].mxu0
        %v2307 = vadd.f32 %v1876, %v2306
        %v2308 = vpop.f32.mrb[0].mxu0
        %v2309 = vadd.f32 %v1880, %v2308
        %v2310 = vpop.f32.mrb[0].mxu0
        %v2311 = vpop.f32.mrb[0].mxu0
        %2312 = vdwg.mxu0
        %2313 = vmatprep.subr.bf16.mxu0 %v2177
        %2314 = vmatpush1.bf16.msra.mxu0 %v2176
        %2315 = vmatprep.subr.bf16.mxu0 %v2180
        %2316 = vmatpush1.bf16.msra.mxu0 %v2179
        %2317 = vmatprep.subr.bf16.mxu0 %v2183
        %2318 = vmatpush1.bf16.msra.mxu0 %v2182
        %2319 = vmatprep.subr.bf16.mxu0 %v2186
        %2320 = vmatpush1.bf16.msra.mxu0 %v2185
        %2321 = vmatprep.subr.bf16.mxu0 %v2189
        %2322 = vmatpush1.bf16.msra.mxu0 %v2188
        %2323 = vmatprep.subr.bf16.mxu0 %v2192
        %2324 = vmatpush1.bf16.msra.mxu0 %v2191
        %2325 = vmatprep.subr.bf16.mxu0 %v2195
        %2326 = vmatpush1.bf16.msra.mxu0 %v2194
        %2327 = vmatprep.subr.bf16.mxu0 %v2198
        %2328 = vmatpush1.bf16.msra.mxu0 %v2197
        %2329 = vmatprep.subr.bf16.mxu0 0
        %2330 = vmatpush1.bf16.msra.mxu0 0
        %2331 = vmatprep.subr.bf16.mxu0 0
        %2332 = vmatpush1.bf16.msra.mxu0 0
        %2333 = vmatprep.subr.bf16.mxu0 0
        %2334 = vmatpush1.bf16.msra.mxu0 0
        %2335 = vmatprep.subr.bf16.mxu0 0
        %2336 = vmatpush1.bf16.msra.mxu0 0
        %2337 = vmatprep.subr.bf16.mxu0 0
        %2338 = vmatpush1.bf16.msra.mxu0 0
        %2339 = vmatprep.subr.bf16.mxu0 0
        %2340 = vmatpush1.bf16.msra.mxu0 0
        %2341 = vmatprep.subr.bf16.mxu0 0
        %2342 = vmatpush1.bf16.msra.mxu0 0
        %2343 = vmatprep.subr.bf16.mxu0 0
        %2344 = vmatpush1.bf16.msra.mxu0 0
        %2345 = vmatprep.mubr.bf16.mxu0 0
        %2346 = vmatmul.mubr.bf16.gmra.mrb[0].mxu0 %v1774
        %v2347 = vpop.f32.mrb[0].mxu0
        %v2348 = vadd.f32 %v2307, %v2347
        %v2349 = vpop.f32.mrb[0].mxu0
        %v2350 = vadd.f32 %v2309, %v2349
        %v2351 = vpop.f32.mrb[0].mxu0
        %v2352 = vpop.f32.mrb[0].mxu0
        %2353 = vdwg.mxu0
        %2354 = vmatprep.subr.bf16.mxu0 0
        %2355 = vmatpush1.bf16.msra.mxu0 %v2130
        %2356 = vmatprep.subr.bf16.mxu0 0
        %2357 = vmatpush1.bf16.msra.mxu0 %v2133
        %2358 = vmatprep.subr.bf16.mxu0 0
        %2359 = vmatpush1.bf16.msra.mxu0 %v2136
        %2360 = vmatprep.subr.bf16.mxu0 0
        %2361 = vmatpush1.bf16.msra.mxu0 %v2139
        %2362 = vmatprep.subr.bf16.mxu0 0
        %2363 = vmatpush1.bf16.msra.mxu0 %v2142
        %2364 = vmatprep.subr.bf16.mxu0 0
        %2365 = vmatpush1.bf16.msra.mxu0 %v2145
        %2366 = vmatprep.subr.bf16.mxu0 0
        %2367 = vmatpush1.bf16.msra.mxu0 %v2148
        %2368 = vmatprep.subr.bf16.mxu0 0
        %2369 = vmatpush1.bf16.msra.mxu0 %v2151
        %2370 = vmatprep.subr.bf16.mxu0 0
        %2371 = vmatpush1.bf16.msra.mxu0 %v2154
        %2372 = vmatprep.subr.bf16.mxu0 0
        %2373 = vmatpush1.bf16.msra.mxu0 %v2157
        %2374 = vmatprep.subr.bf16.mxu0 0
        %2375 = vmatpush1.bf16.msra.mxu0 %v2160
        %2376 = vmatprep.subr.bf16.mxu0 0
        %2377 = vmatpush1.bf16.msra.mxu0 %v2163
        %2378 = vmatprep.subr.bf16.mxu0 0
        %2379 = vmatpush1.bf16.msra.mxu0 %v2166
        %2380 = vmatprep.subr.bf16.mxu0 0
        %2381 = vmatpush1.bf16.msra.mxu0 %v2169
        %2382 = vmatprep.subr.bf16.mxu0 0
        %2383 = vmatpush1.bf16.msra.mxu0 %v2172
        %2384 = vmatprep.subr.bf16.mxu0 0
        %2385 = vmatpush1.bf16.msra.mxu0 %v2175
        %2386 = vmatprep.mubr.bf16.mxu0 %v1773
        %2387 = vmatmul.mubr.bf16.gmra.mrb[0].mxu0 %v1772
        %v2388 = vpop.f32.mrb[0].mxu0
        %v2389 = vadd.f32 %v1884, %v2388
        %v2390 = vpop.f32.mrb[0].mxu0
        %v2391 = vpop.f32.mrb[0].mxu0
        %v2392 = vpop.f32.mrb[0].mxu0
        %2393 = vdwg.mxu0
        %2394 = vmatprep.subr.bf16.mxu0 0
        %2395 = vmatpush1.bf16.msra.mxu0 %v2178
        %2396 = vmatprep.subr.bf16.mxu0 0
        %2397 = vmatpush1.bf16.msra.mxu0 %v2181
        %2398 = vmatprep.subr.bf16.mxu0 0
        %2399 = vmatpush1.bf16.msra.mxu0 %v2184
        %2400 = vmatprep.subr.bf16.mxu0 0
        %2401 = vmatpush1.bf16.msra.mxu0 %v2187
        %2402 = vmatprep.subr.bf16.mxu0 0
        %2403 = vmatpush1.bf16.msra.mxu0 %v2190
        %2404 = vmatprep.subr.bf16.mxu0 0
        %2405 = vmatpush1.bf16.msra.mxu0 %v2193
        %2406 = vmatprep.subr.bf16.mxu0 0
        %2407 = vmatpush1.bf16.msra.mxu0 %v2196
        %2408 = vmatprep.subr.bf16.mxu0 0
        %2409 = vmatpush1.bf16.msra.mxu0 %v2199
        %2410 = vmatprep.subr.bf16.mxu0 0
        %2411 = vmatpush1.bf16.msra.mxu0 0
        %2412 = vmatprep.subr.bf16.mxu0 0
        %2413 = vmatpush1.bf16.msra.mxu0 0
        %2414 = vmatprep.subr.bf16.mxu0 0
        %2415 = vmatpush1.bf16.msra.mxu0 0
        %2416 = vmatprep.subr.bf16.mxu0 0
        %2417 = vmatpush1.bf16.msra.mxu0 0
        %2418 = vmatprep.subr.bf16.mxu0 0
        %2419 = vmatpush1.bf16.msra.mxu0 0
        %2420 = vmatprep.subr.bf16.mxu0 0
        %2421 = vmatpush1.bf16.msra.mxu0 0
        %2422 = vmatprep.subr.bf16.mxu0 0
        %2423 = vmatpush1.bf16.msra.mxu0 0
        %2424 = vmatprep.subr.bf16.mxu0 0
        %2425 = vmatpush1.bf16.msra.mxu0 0
        %2426 = vmatprep.mubr.bf16.mxu0 0
        %2427 = vmatmul.mubr.bf16.gmra.mrb[0].mxu0 %v1774
        %v2428 = vpop.f32.mrb[0].mxu0
        %v2429 = vadd.f32 %v2389, %v2428
        %v2430 = vpop.f32.mrb[0].mxu0
        %v2431 = vpop.f32.mrb[0].mxu0
        %v2432 = vpop.f32.mrb[0].mxu0
        %2433 = vdwg.mxu0
        %v2434 = vxor.u32 %v2348, 2147483648
        %v2435 = vxor.u32 %v2350, 2147483648
        %v2436 = vxor.u32 %v2429, 2147483648
        %v2437 = vmul.f32 %v2434, 1.442695
        %v2438 = vpow.pop %v2437
        %v2439 = vmul.f32 %v2435, 1.442695
        %v2440 = vpow.pop %v2439
        %v2441 = vmul.f32 %v2436, 1.442695
        %v2442 = vpow.pop %v2441
        %v2443 = vadd.f32 %v2438, 1.0
        %v2444 = vadd.f32 %v2440, 1.0
        %v2445 = vadd.f32 %v2442, 1.0
        %v2446 = vrcp.pop %v2443
        %v2447 = vmul.f32 1.0, %v2446
        %v2448 = vrcp.pop %v2444
        %v2449 = vmul.f32 1.0, %v2448
        %v2450 = vrcp.pop %v2445
        %v2451 = vmul.f32 1.0, %v2450
        %2452 = vst [vmem:[%s446] sm:$0xff] %v2447
        %2453 = vst [vmem:[%s446 + $0x8] sm:$0xff] %v2449
        %2454 = vst [vmem:[%s446 + $0x10] sm:$0xff] %v2451
        %s2455 = sand.u32 %s257, 1
        %s2456 = scalar_lea.sflag [#allocation4], %s2455
        %s2457 = sand.u32 %s257, 1
        %s2458 = smul.addr %s2457, 24
        %s2459 = scalar_lea.vmem [#allocation11], %s2458
        // Predicated region
        $region81: #{tpu_custom_call.1} parent=59 // pred_check
          %p2460 = pneg %p267
        $region82: #{tpu_custom_call.1} parent=59 // pred_check_branch
          %2462 = sbr.rel (%p2460) target = $region84
        $region83: #{tpu_custom_call.1} parent=59 // pred_region
          %s2464 = ssub.s32 384, 384
          %2465 = vsyncadd %s2456, %s2464
          %s2466 = smul.addr %s29, 3
          %s2467 = smul.addr %s2466, 128
          %s2468 = scalar_lea.hbm %s10, %s2467
          %s2470 = sshll.u32 %s2459, 4
          %s2471 = int_to_ptr.vmem [resolvable:$true] %s2470
          %2473 = dma.vmem_to_hbm [thread:$0]  %s2471, 384, %s2468, %s2456
        $region84: #{tpu_custom_call.1} parent=59 // pred_fallthru
          _
      $region60: #{tpu_custom_call.1} parent=5 // pred_fallthru
        _
      %p2474 = scmp.le.s32.totalorder 2, %s24
      // Predicated region
      $region85: #{tpu_custom_call.1} parent=5 // pred_check
        %p2475 = pneg %p2474
      $region86: #{tpu_custom_call.1} parent=5 // pred_check_branch
        %2477 = sbr.rel (%p2475) target = $region88
      $region87: #{tpu_custom_call.1} parent=5 // pred_region
        %s2478 = ssub.s32 %s24, 2
        // Predicated region
        $region89: #{tpu_custom_call.1} parent=87 // pred_check
          %p2479 = pneg %p273
        $region90: #{tpu_custom_call.1} parent=87 // pred_check_branch
          %2481 = sbr.rel (%p2479) target = $region92
        $region91: #{tpu_custom_call.1} parent=87 // pred_region
          %s2482 = sand.u32 %s258, 1
          %s2483 = scalar_lea.sflag [#allocation4], %s2482
          %s2484 = sand.u32 %s258, 1
          %s2485 = smul.addr %s2484, 24
          %s2486 = scalar_lea.vmem [#allocation11], %s2485
          %2487 = dma.done %s2483, 384
        $region92: #{tpu_custom_call.1} parent=87 // pred_fallthru
          _
      $region88: #{tpu_custom_call.1} parent=5 // pred_fallthru
        _
    $region6: #{tpu_custom_call.1} parent=1 // loop_footer
      %s28 = sadd.s32 1, %s24
    $region7: #{tpu_custom_call.1} parent=1 // loop_footer_branch
      %23 = sbr.rel target = $region3
    $region8: #{tpu_custom_call.1} parent=1 // loop_exit
      _
    %2488 = vsyncpa [#allocation3], 1
    %s2489 = scalar_lea.sflag [#allocation3], 1
    %2490 = vsyncpa %s2489, 1
    %2491 = vsyncpa [#allocation6], 1
    %2492 = vsyncpa [#allocation9], 1
    %2493 = vsyncpa [#allocation4], 1
    %s2494 = scalar_lea.sflag [#allocation4], 1
    %2495 = vsyncpa %s2494, 1

</llo_original>
